<compile_context>
chip_gen: v7x
topology: tpu7x:2x2x1
jax: 0.10.0
libtpu: 0.0.40
codegen_flags: <defaults>
</compile_context>

<pallas_src>
import jax
import jax.numpy as jnp
from jax.experimental import pallas as pl
from jax.experimental.pallas import tpu as pltpu

STRIDE = 3                 # stride_temporal
KSIZE = 9                  # kerSize_temporal
NGROUP = KSIZE // STRIDE   # 3 shifted-window matmuls implement the temporal conv


def eeg_kernel(x_ref, bn1s_ref, bn1b_ref, w1_ref, b1_ref, bn2s_ref, bn2b_ref,
               wconv_ref, b2_ref, wtd1_ref, btd1_ref, wtd2_ref, btd2_ref,
               out_ref, h_scr):
    tp = out_ref.shape[0]                 # output time steps T' = T/3 - 2
    f512 = wconv_ref.shape[-1]            # filters_cnn * spatial_filters = 512

    # BatchNorm1d(64) folded to per-channel affine, broadcast over packed time rows.
    xb = x_ref[...] * bn1s_ref[...] + bn1b_ref[...]                   # (Q, 3*64) f32

    # Pointwise Conv1d(64->32) as block-diagonal MXU matmul (+bias, ReLU),
    # then BatchNorm1d(32) affine.  Staged into VMEM scratch for window slicing.
    h = jnp.dot(xb.astype(jnp.bfloat16), w1_ref[...],
                preferred_element_type=jnp.float32)                   # (Q, 3*32)
    h = jnp.maximum(h + b1_ref[...], 0.0)
    h_scr[...] = h * bn2s_ref[...] + bn2b_ref[...]

    # Temporal Conv2d (kernel (9,1), stride (3,1), 'valid') as NGROUP accumulated
    # matmuls over unit-stride shifted windows of the packed (Q, 96) buffer.
    acc = jnp.zeros((tp, f512), jnp.float32)
    for j in range(NGROUP):
        win = h_scr[pl.ds(j, tp), :].astype(jnp.bfloat16)             # (Tp, 96)
        acc = acc + jnp.dot(win, wconv_ref[j],
                            preferred_element_type=jnp.float32)       # (Tp, 512)
    o512 = jnp.maximum(acc + b2_ref[...], 0.0)

    # TimeDistributed Linear(512,128)+ReLU, Linear(128,32)+ReLU.
    y1 = jnp.dot(o512.astype(jnp.bfloat16), wtd1_ref[...],
                 preferred_element_type=jnp.float32) + btd1_ref[...]
    y1 = jnp.maximum(y1, 0.0)
    y2 = jnp.dot(y1.astype(jnp.bfloat16), wtd2_ref[...],
                 preferred_element_type=jnp.float32) + btd2_ref[...]
    out_ref[...] = jnp.maximum(y2, 0.0).astype(out_ref.dtype)


def _fold_params(p, eps=1e-5):
    """Parameter plumbing only (no activation compute).

    Folds BN running stats into scale/shift, builds the block-diagonal 1x1-conv
    matrix, the shifted-window temporal-conv matrices, and pre-transposed / bf16
    matmul weights.
    """
    f32, bf16 = jnp.float32, jnp.bfloat16
    s_f = p["w_conv1"].shape[0]           # 32 spatial filters
    f_c = p["w_conv2"].shape[0]           # 16 temporal filters

    s1 = p["bn1_gamma"] / jnp.sqrt(p["bn1_var"] + eps)
    sh1 = p["bn1_beta"] - p["bn1_mean"] * s1
    s2 = p["bn2_gamma"] / jnp.sqrt(p["bn2_var"] + eps)
    sh2 = p["bn2_beta"] - p["bn2_mean"] * s2

    # Conv1d(k=1) applied to 3 packed time slots per row -> block-diagonal (192, 96).
    w1_block = jnp.kron(jnp.eye(STRIDE, dtype=f32), p["w_conv1"].T.astype(f32))

    # Temporal conv: k = 3*j + r ;  W_conv[j, r*32+s, f*32+s'] = w2[f, k] * (s == s').
    w2r = p["w_conv2"].astype(f32).reshape(f_c, NGROUP, STRIDE)       # [f, j, r]
    wconv = jnp.einsum("fjr,su->jrsfu", w2r, jnp.eye(s_f, dtype=f32))
    wconv = wconv.reshape(NGROUP, STRIDE * s_f, f_c * s_f)            # (3, 96, 512)

    return dict(
        bn1_scale=jnp.tile(s1, STRIDE).reshape(1, -1).astype(f32),
        bn1_shift=jnp.tile(sh1, STRIDE).reshape(1, -1).astype(f32),
        w1=w1_block.astype(bf16),
        b1=jnp.tile(p["b_conv1"], STRIDE).reshape(1, -1).astype(f32),
        bn2_scale=jnp.tile(s2, STRIDE).reshape(1, -1).astype(f32),
        bn2_shift=jnp.tile(sh2, STRIDE).reshape(1, -1).astype(f32),
        wconv=wconv.astype(bf16),
        b2=jnp.repeat(p["b_conv2"], s_f).reshape(1, -1).astype(f32),
        wtd1=p["w_td1"].T.astype(bf16),
        btd1=p["b_td1"].reshape(1, -1).astype(f32),
        wtd2=p["w_td2"].T.astype(bf16),
        btd2=p["b_td2"].reshape(1, -1).astype(f32),
    )


def eeg_forward(x, params):
    """x: (B, T, 64) -> (B, T', 32),  T' = (T - 9)//3 + 1.  Requires T % 3 == 0."""
    b, t, c = x.shape
    assert t % STRIDE == 0 and t >= KSIZE, "T must be a multiple of 3 and >= 9"
    q = t // STRIDE
    tp = (t - KSIZE) // STRIDE + 1

    fp = _fold_params(params)
    units = fp["wtd2"].shape[1]

    # Glue: pack 3 consecutive time steps per row (row-major reshape, no compute).
    x_resh = x.reshape(b, q, STRIDE * c).astype(jnp.float32)

    const2 = lambda a: pl.BlockSpec(a.shape, lambda i: (0, 0))
    const3 = lambda a: pl.BlockSpec(a.shape, lambda i: (0, 0, 0))

    out = pl.pallas_call(
        eeg_kernel,
        out_shape=jax.ShapeDtypeStruct((b, tp, units), jnp.float32),
        grid=(b,),
        in_specs=[
            pl.BlockSpec((None, q, STRIDE * c), lambda i: (i, 0, 0)),   # x, 1 batch/step
            const2(fp["bn1_scale"]), const2(fp["bn1_shift"]),
            const2(fp["w1"]), const2(fp["b1"]),
            const2(fp["bn2_scale"]), const2(fp["bn2_shift"]),
            const3(fp["wconv"]), const2(fp["b2"]),
            const2(fp["wtd1"]), const2(fp["btd1"]),
            const2(fp["wtd2"]), const2(fp["btd2"]),
        ],
        out_specs=pl.BlockSpec((None, tp, units), lambda i: (i, 0, 0)),
        scratch_shapes=[pltpu.VMEM((q, STRIDE * params["w_conv1"].shape[0]),
                                   jnp.float32)],
        compiler_params=pltpu.CompilerParams(
            dimension_semantics=("parallel",),       # megacore split on v7x
            vmem_limit_bytes=48 * 1024 * 1024,       # leaves headroom on v7x (64 MiB)
        ),
    )(x_resh, fp["bn1_scale"], fp["bn1_shift"], fp["w1"], fp["b1"],
      fp["bn2_scale"], fp["bn2_shift"], fp["wconv"], fp["b2"],
      fp["wtd1"], fp["btd1"], fp["wtd2"], fp["btd2"])
    return out


def eeg_forward_ref(x, p, eps=1e-5):
    """Pure-JAX reference following the PyTorch graph (eval-mode BN, bf16 weights)."""
    f32 = jnp.float32
    bf = lambda w: w.astype(jnp.bfloat16).astype(f32)
    b, t, _ = x.shape
    tp = (t - KSIZE) // STRIDE + 1
    xt = jnp.transpose(x.astype(f32), (0, 2, 1))                       # (B, 64, T)
    s1 = p["bn1_gamma"] / jnp.sqrt(p["bn1_var"] + eps)
    xt = (xt - p["bn1_mean"][None, :, None]) * s1[None, :, None] + p["bn1_beta"][None, :, None]
    h = jnp.einsum("oc,bct->bot", bf(p["w_conv1"]), xt) + p["b_conv1"][None, :, None]
    h = jnp.maximum(h, 0.0)                                            # (B, 32, T)
    s2 = p["bn2_gamma"] / jnp.sqrt(p["bn2_var"] + eps)
    h = (h - p["bn2_mean"][None, :, None]) * s2[None, :, None] + p["bn2_beta"][None, :, None]
    ht = jnp.transpose(h, (0, 2, 1))                                   # (B, T, 32)
    win = jnp.stack([ht[:, STRIDE * i: STRIDE * i + KSIZE, :] for i in range(tp)], axis=1)
    conv = jnp.einsum("btks,fk->btfs", win, bf(p["w_conv2"])) + p["b_conv2"][None, None, :, None]
    conv = jnp.maximum(conv, 0.0)                                      # (B, Tp, 16, 32)
    flat = conv.reshape(b, tp, -1)                                     # (B, Tp, 512)
    y1 = jnp.maximum(flat @ bf(p["w_td1"]).T + p["b_td1"], 0.0)
    y2 = jnp.maximum(y1 @ bf(p["w_td2"]).T + p["b_td2"], 0.0)
    return y2


def make_params(key, in_channels=64, spatial_filters=32, filters_cnn=16,
                units_hidden=128, units_lstm=32):
    ks = jax.random.split(key, 16)
    n = lambda k, shape, scale: jax.random.normal(k, shape, jnp.float32) * scale
    d512 = spatial_filters * filters_cnn
    return {
        "bn1_gamma": 1.0 + 0.1 * jax.random.normal(ks[0], (in_channels,), jnp.float32),
        "bn1_beta": 0.1 * jax.random.normal(ks[1], (in_channels,), jnp.float32),
        "bn1_mean": 0.1 * jax.random.normal(ks[2], (in_channels,), jnp.float32),
        "bn1_var": 0.8 + 0.4 * jax.random.uniform(ks[3], (in_channels,), jnp.float32),
        "w_conv1": n(ks[4], (spatial_filters, in_channels), in_channels ** -0.5),
        "b_conv1": n(ks[5], (spatial_filters,), 0.1),
        "bn2_gamma": 1.0 + 0.1 * jax.random.normal(ks[6], (spatial_filters,), jnp.float32),
        "bn2_beta": 0.1 * jax.random.normal(ks[7], (spatial_filters,), jnp.float32),
        "bn2_mean": 0.1 * jax.random.normal(ks[8], (spatial_filters,), jnp.float32),
        "bn2_var": 0.8 + 0.4 * jax.random.uniform(ks[9], (spatial_filters,), jnp.float32),
        "w_conv2": n(ks[10], (filters_cnn, KSIZE), KSIZE ** -0.5),
        "b_conv2": n(ks[11], (filters_cnn,), 0.1),
        "w_td1": n(ks[12], (units_hidden, d512), d512 ** -0.5),
        "b_td1": n(ks[13], (units_hidden,), 0.1),
        "w_td2": n(ks[14], (units_lstm, units_hidden), units_hidden ** -0.5),
        "b_td2": n(ks[15], (units_lstm,), 0.1),
    }


if __name__ == "__main__":
    key = jax.random.PRNGKey(0)
    kx, kp = jax.random.split(key)

    # small shapes: batch=2, time=48 (multiple of 3), channels=64 -> T' = 14
    B, T, C = 2, 48, 64
    x = jax.random.normal(kx, (B, T, C), jnp.float32)
    params = make_params(kp)

    out = jax.jit(eeg_forward)(x, params)
    jax.block_until_ready(out)

    Tp = (T - KSIZE) // STRIDE + 1
    assert out.shape == (B, Tp, 32), out.shape
    assert bool(jnp.all(jnp.isfinite(out)))

    ref = eeg_forward_ref(x, params)
    err = float(jnp.max(jnp.abs(out - ref)))
    assert err < 5e-2, f"max abs err vs reference: {err}"
    print("KERNEL_OK")
</pallas_src>

<mosaic_0001>
module attributes {stable_mosaic.version = 11 : i64} {
  func.func @eeg_kernel(%arg0: i32, %arg1: memref<1x16x192xf32, #tpu.memory_space<vmem>>, %arg2: memref<1x192xf32, #tpu.memory_space<vmem>>, %arg3: memref<1x192xf32, #tpu.memory_space<vmem>>, %arg4: memref<192x96xbf16, #tpu.memory_space<vmem>>, %arg5: memref<1x96xf32, #tpu.memory_space<vmem>>, %arg6: memref<1x96xf32, #tpu.memory_space<vmem>>, %arg7: memref<1x96xf32, #tpu.memory_space<vmem>>, %arg8: memref<3x96x512xbf16, #tpu.memory_space<vmem>>, %arg9: memref<1x512xf32, #tpu.memory_space<vmem>>, %arg10: memref<512x128xbf16, #tpu.memory_space<vmem>>, %arg11: memref<1x128xf32, #tpu.memory_space<vmem>>, %arg12: memref<128x32xbf16, #tpu.memory_space<vmem>>, %arg13: memref<1x32xf32, #tpu.memory_space<vmem>>, %arg14: memref<1x14x32xf32, #tpu.memory_space<vmem>>, %arg15: memref<16x96xf32, #tpu.memory_space<vmem>>) attributes {dimension_semantics = [#tpu.dimension_semantics<parallel>], iteration_bounds = array<i64: 2>, scalar_prefetch = 0 : i64, scratch_operands = 1 : i64, tpu.core_type = #tpu.core_type<tc>, window_params = [{transform_indices = @transform_0, window_bounds = array<i64: 1, 16, 192>}, {pipeline_mode = #tpu.pipeline_mode<synchronous>, transform_indices = @transform_1, window_bounds = array<i64: 1, 192>}, {pipeline_mode = #tpu.pipeline_mode<synchronous>, transform_indices = @transform_2, window_bounds = array<i64: 1, 192>}, {pipeline_mode = #tpu.pipeline_mode<synchronous>, transform_indices = @transform_3, window_bounds = array<i64: 192, 96>}, {pipeline_mode = #tpu.pipeline_mode<synchronous>, transform_indices = @transform_4, window_bounds = array<i64: 1, 96>}, {pipeline_mode = #tpu.pipeline_mode<synchronous>, transform_indices = @transform_5, window_bounds = array<i64: 1, 96>}, {pipeline_mode = #tpu.pipeline_mode<synchronous>, transform_indices = @transform_6, window_bounds = array<i64: 1, 96>}, {pipeline_mode = #tpu.pipeline_mode<synchronous>, transform_indices = @transform_7, window_bounds = array<i64: 3, 96, 512>}, {pipeline_mode = #tpu.pipeline_mode<synchronous>, transform_indices = @transform_8, window_bounds = array<i64: 1, 512>}, {pipeline_mode = #tpu.pipeline_mode<synchronous>, transform_indices = @transform_9, window_bounds = array<i64: 512, 128>}, {pipeline_mode = #tpu.pipeline_mode<synchronous>, transform_indices = @transform_10, window_bounds = array<i64: 1, 128>}, {pipeline_mode = #tpu.pipeline_mode<synchronous>, transform_indices = @transform_11, window_bounds = array<i64: 128, 32>}, {pipeline_mode = #tpu.pipeline_mode<synchronous>, transform_indices = @transform_12, window_bounds = array<i64: 1, 32>}, {transform_indices = @transform_13, window_bounds = array<i64: 1, 14, 32>}]} {
    %c0 = arith.constant 0 : index
    %c0_0 = arith.constant 0 : index
    %c0_1 = arith.constant 0 : index
    %0 = vector.load %arg1[%c0, %c0_0, %c0_1] : memref<1x16x192xf32, #tpu.memory_space<vmem>>, vector<1x16x192xf32>
    %1 = vector.shape_cast %0 : vector<1x16x192xf32> to vector<16x192xf32>
    %c0_2 = arith.constant 0 : index
    %c0_3 = arith.constant 0 : index
    %2 = vector.load %arg2[%c0_2, %c0_3] : memref<1x192xf32, #tpu.memory_space<vmem>>, vector<1x192xf32>
    %3 = vector.broadcast %2 : vector<1x192xf32> to vector<16x192xf32>
    %4 = arith.mulf %1, %3 : vector<16x192xf32>
    %c0_4 = arith.constant 0 : index
    %c0_5 = arith.constant 0 : index
    %5 = vector.load %arg3[%c0_4, %c0_5] : memref<1x192xf32, #tpu.memory_space<vmem>>, vector<1x192xf32>
    %6 = vector.broadcast %5 : vector<1x192xf32> to vector<16x192xf32>
    %7 = arith.addf %4, %6 : vector<16x192xf32>
    %8 = arith.truncf %7 : vector<16x192xf32> to vector<16x192xbf16>
    %c0_6 = arith.constant 0 : index
    %c0_7 = arith.constant 0 : index
    %9 = vector.load %arg4[%c0_6, %c0_7] : memref<192x96xbf16, #tpu.memory_space<vmem>>, vector<192x96xbf16>
    %cst = arith.constant dense<0.000000e+00> : vector<16x96xf32>
    %10 = tpu.matmul %8, %9, %cst {dimension_numbers = #tpu.dot_dimension_numbers<[1], [0], [0], [1], [0, 0, 1, 1], [], []>} : vector<16x192xbf16>, vector<192x96xbf16>, vector<16x96xf32> -> vector<16x96xf32>
    %c0_8 = arith.constant 0 : index
    %c0_9 = arith.constant 0 : index
    %11 = vector.load %arg5[%c0_8, %c0_9] : memref<1x96xf32, #tpu.memory_space<vmem>>, vector<1x96xf32>
    %12 = vector.broadcast %11 : vector<1x96xf32> to vector<16x96xf32>
    %13 = arith.addf %10, %12 : vector<16x96xf32>
    %cst_10 = arith.constant 0.000000e+00 : f32
    %14 = vector.broadcast %cst_10 : f32 to vector<16x96xf32>
    %15 = arith.maximumf %13, %14 : vector<16x96xf32>
    %c0_11 = arith.constant 0 : index
    %c0_12 = arith.constant 0 : index
    %16 = vector.load %arg6[%c0_11, %c0_12] : memref<1x96xf32, #tpu.memory_space<vmem>>, vector<1x96xf32>
    %17 = vector.broadcast %16 : vector<1x96xf32> to vector<16x96xf32>
    %18 = arith.mulf %15, %17 : vector<16x96xf32>
    %c0_13 = arith.constant 0 : index
    %c0_14 = arith.constant 0 : index
    %19 = vector.load %arg7[%c0_13, %c0_14] : memref<1x96xf32, #tpu.memory_space<vmem>>, vector<1x96xf32>
    %20 = vector.broadcast %19 : vector<1x96xf32> to vector<16x96xf32>
    %21 = arith.addf %18, %20 : vector<16x96xf32>
    %c0_15 = arith.constant 0 : index
    %c0_16 = arith.constant 0 : index
    %22 = vector.load %arg15[%c0_15, %c0_16] : memref<16x96xf32, #tpu.memory_space<vmem>>, vector<16x96xf32>
    tpu.vector_store %arg15[%c0_15, %c0_16], %21 {strides = array<i32>} : memref<16x96xf32, #tpu.memory_space<vmem>>, vector<16x96xf32>,
    %cst_17 = arith.constant 0.000000e+00 : f32
    %23 = vector.broadcast %cst_17 : f32 to vector<14x512xf32>
    %c0_18 = arith.constant 0 : index
    %c0_19 = arith.constant 0 : index
    %24 = vector.load %arg15[%c0_18, %c0_19] : memref<16x96xf32, #tpu.memory_space<vmem>>, vector<14x96xf32>
    %25 = arith.truncf %24 : vector<14x96xf32> to vector<14x96xbf16>
    %c0_20 = arith.constant 0 : index
    %c0_21 = arith.constant 0 : index
    %c0_22 = arith.constant 0 : index
    %26 = vector.load %arg8[%c0_20, %c0_21, %c0_22] : memref<3x96x512xbf16, #tpu.memory_space<vmem>>, vector<1x96x512xbf16>
    %27 = vector.shape_cast %26 : vector<1x96x512xbf16> to vector<96x512xbf16>
    %cst_23 = arith.constant dense<0.000000e+00> : vector<14x512xf32>
    %28 = tpu.matmul %25, %27, %cst_23 {dimension_numbers = #tpu.dot_dimension_numbers<[1], [0], [0], [1], [0, 0, 1, 1], [], []>} : vector<14x96xbf16>, vector<96x512xbf16>, vector<14x512xf32> -> vector<14x512xf32>
    %29 = arith.addf %23, %28 : vector<14x512xf32>
    %c1 = arith.constant 1 : index
    %c0_24 = arith.constant 0 : index
    %30 = vector.load %arg15[%c1, %c0_24] : memref<16x96xf32, #tpu.memory_space<vmem>>, vector<14x96xf32>
    %31 = arith.truncf %30 : vector<14x96xf32> to vector<14x96xbf16>
    %c1_25 = arith.constant 1 : index
    %c0_26 = arith.constant 0 : index
    %c0_27 = arith.constant 0 : index
    %32 = vector.load %arg8[%c1_25, %c0_26, %c0_27] : memref<3x96x512xbf16, #tpu.memory_space<vmem>>, vector<1x96x512xbf16>
    %33 = vector.shape_cast %32 : vector<1x96x512xbf16> to vector<96x512xbf16>
    %cst_28 = arith.constant dense<0.000000e+00> : vector<14x512xf32>
    %34 = tpu.matmul %31, %33, %cst_28 {dimension_numbers = #tpu.dot_dimension_numbers<[1], [0], [0], [1], [0, 0, 1, 1], [], []>} : vector<14x96xbf16>, vector<96x512xbf16>, vector<14x512xf32> -> vector<14x512xf32>
    %35 = arith.addf %29, %34 : vector<14x512xf32>
    %c2 = arith.constant 2 : index
    %c0_29 = arith.constant 0 : index
    %36 = vector.load %arg15[%c2, %c0_29] : memref<16x96xf32, #tpu.memory_space<vmem>>, vector<14x96xf32>
    %37 = arith.truncf %36 : vector<14x96xf32> to vector<14x96xbf16>
    %c2_30 = arith.constant 2 : index
    %c0_31 = arith.constant 0 : index
    %c0_32 = arith.constant 0 : index
    %38 = vector.load %arg8[%c2_30, %c0_31, %c0_32] : memref<3x96x512xbf16, #tpu.memory_space<vmem>>, vector<1x96x512xbf16>
    %39 = vector.shape_cast %38 : vector<1x96x512xbf16> to vector<96x512xbf16>
    %cst_33 = arith.constant dense<0.000000e+00> : vector<14x512xf32>
    %40 = tpu.matmul %37, %39, %cst_33 {dimension_numbers = #tpu.dot_dimension_numbers<[1], [0], [0], [1], [0, 0, 1, 1], [], []>} : vector<14x96xbf16>, vector<96x512xbf16>, vector<14x512xf32> -> vector<14x512xf32>
    %41 = arith.addf %35, %40 : vector<14x512xf32>
    %c0_34 = arith.constant 0 : index
    %c0_35 = arith.constant 0 : index
    %42 = vector.load %arg9[%c0_34, %c0_35] : memref<1x512xf32, #tpu.memory_space<vmem>>, vector<1x512xf32>
    %43 = vector.broadcast %42 : vector<1x512xf32> to vector<14x512xf32>
    %44 = arith.addf %41, %43 : vector<14x512xf32>
    %cst_36 = arith.constant 0.000000e+00 : f32
    %45 = vector.broadcast %cst_36 : f32 to vector<14x512xf32>
    %46 = arith.maximumf %44, %45 : vector<14x512xf32>
    %47 = arith.truncf %46 : vector<14x512xf32> to vector<14x512xbf16>
    %c0_37 = arith.constant 0 : index
    %c0_38 = arith.constant 0 : index
    %48 = vector.load %arg10[%c0_37, %c0_38] : memref<512x128xbf16, #tpu.memory_space<vmem>>, vector<512x128xbf16>
    %cst_39 = arith.constant dense<0.000000e+00> : vector<14x128xf32>
    %49 = tpu.matmul %47, %48, %cst_39 {dimension_numbers = #tpu.dot_dimension_numbers<[1], [0], [0], [1], [0, 0, 1, 1], [], []>} : vector<14x512xbf16>, vector<512x128xbf16>, vector<14x128xf32> -> vector<14x128xf32>
    %c0_40 = arith.constant 0 : index
    %c0_41 = arith.constant 0 : index
    %50 = vector.load %arg11[%c0_40, %c0_41] : memref<1x128xf32, #tpu.memory_space<vmem>>, vector<1x128xf32>
    %51 = vector.broadcast %50 : vector<1x128xf32> to vector<14x128xf32>
    %52 = arith.addf %49, %51 : vector<14x128xf32>
    %cst_42 = arith.constant 0.000000e+00 : f32
    %53 = vector.broadcast %cst_42 : f32 to vector<14x128xf32>
    %54 = arith.maximumf %52, %53 : vector<14x128xf32>
    %55 = arith.truncf %54 : vector<14x128xf32> to vector<14x128xbf16>
    %c0_43 = arith.constant 0 : index
    %c0_44 = arith.constant 0 : index
    %56 = vector.load %arg12[%c0_43, %c0_44] : memref<128x32xbf16, #tpu.memory_space<vmem>>, vector<128x32xbf16>
    %cst_45 = arith.constant dense<0.000000e+00> : vector<14x32xf32>
    %57 = tpu.matmul %55, %56, %cst_45 {dimension_numbers = #tpu.dot_dimension_numbers<[1], [0], [0], [1], [0, 0, 1, 1], [], []>} : vector<14x128xbf16>, vector<128x32xbf16>, vector<14x32xf32> -> vector<14x32xf32>
    %c0_46 = arith.constant 0 : index
    %c0_47 = arith.constant 0 : index
    %58 = vector.load %arg13[%c0_46, %c0_47] : memref<1x32xf32, #tpu.memory_space<vmem>>, vector<1x32xf32>
    %59 = vector.broadcast %58 : vector<1x32xf32> to vector<14x32xf32>
    %60 = arith.addf %57, %59 : vector<14x32xf32>
    %cst_48 = arith.constant 0.000000e+00 : f32
    %61 = vector.broadcast %cst_48 : f32 to vector<14x32xf32>
    %62 = arith.maximumf %60, %61 : vector<14x32xf32>
    %c0_49 = arith.constant 0 : index
    %c0_50 = arith.constant 0 : index
    %c0_51 = arith.constant 0 : index
    %63 = vector.load %arg14[%c0_49, %c0_50, %c0_51] : memref<1x14x32xf32, #tpu.memory_space<vmem>>, vector<1x14x32xf32>
    %64 = vector.shape_cast %63 : vector<1x14x32xf32> to vector<14x32xf32>
    %65 = vector.shape_cast %62 : vector<14x32xf32> to vector<1x14x32xf32>
    tpu.vector_store %arg14[%c0_49, %c0_50, %c0_51], %65 {strides = array<i32>} : memref<1x14x32xf32, #tpu.memory_space<vmem>>, vector<1x14x32xf32>,
    return
  }
  func.func @transform_0(%arg0: i32) -> (i32, i32, i32) {
    %c0_i32 = arith.constant 0 : i32
    %c0_i32_0 = arith.constant 0 : i32
    %c0_i32_1 = arith.constant 0 : i32
    return %arg0, %c0_i32, %c0_i32_0 : i32, i32, i32
  }
  func.func @transform_1(%arg0: i32) -> (i32, i32) {
    %c0_i32 = arith.constant 0 : i32
    %c0_i32_0 = arith.constant 0 : i32
    %c0_i32_1 = arith.constant 0 : i32
    return %c0_i32, %c0_i32_0 : i32, i32
  }
  func.func @transform_2(%arg0: i32) -> (i32, i32) {
    %c0_i32 = arith.constant 0 : i32
    %c0_i32_0 = arith.constant 0 : i32
    %c0_i32_1 = arith.constant 0 : i32
    return %c0_i32, %c0_i32_0 : i32, i32
  }
  func.func @transform_3(%arg0: i32) -> (i32, i32) {
    %c0_i32 = arith.constant 0 : i32
    %c0_i32_0 = arith.constant 0 : i32
    %c0_i32_1 = arith.constant 0 : i32
    return %c0_i32, %c0_i32_0 : i32, i32
  }
  func.func @transform_4(%arg0: i32) -> (i32, i32) {
    %c0_i32 = arith.constant 0 : i32
    %c0_i32_0 = arith.constant 0 : i32
    %c0_i32_1 = arith.constant 0 : i32
    return %c0_i32, %c0_i32_0 : i32, i32
  }
  func.func @transform_5(%arg0: i32) -> (i32, i32) {
    %c0_i32 = arith.constant 0 : i32
    %c0_i32_0 = arith.constant 0 : i32
    %c0_i32_1 = arith.constant 0 : i32
    return %c0_i32, %c0_i32_0 : i32, i32
  }
  func.func @transform_6(%arg0: i32) -> (i32, i32) {
    %c0_i32 = arith.constant 0 : i32
    %c0_i32_0 = arith.constant 0 : i32
    %c0_i32_1 = arith.constant 0 : i32
    return %c0_i32, %c0_i32_0 : i32, i32
  }
  func.func @transform_7(%arg0: i32) -> (i32, i32, i32) {
    %c0_i32 = arith.constant 0 : i32
    %c0_i32_0 = arith.constant 0 : i32
    %c0_i32_1 = arith.constant 0 : i32
    %c0_i32_2 = arith.constant 0 : i32
    return %c0_i32, %c0_i32_0, %c0_i32_1 : i32, i32, i32
  }
  func.func @transform_8(%arg0: i32) -> (i32, i32) {
    %c0_i32 = arith.constant 0 : i32
    %c0_i32_0 = arith.constant 0 : i32
    %c0_i32_1 = arith.constant 0 : i32
    return %c0_i32, %c0_i32_0 : i32, i32
  }
  func.func @transform_9(%arg0: i32) -> (i32, i32) {
    %c0_i32 = arith.constant 0 : i32
    %c0_i32_0 = arith.constant 0 : i32
    %c0_i32_1 = arith.constant 0 : i32
    return %c0_i32, %c0_i32_0 : i32, i32
  }
  func.func @transform_10(%arg0: i32) -> (i32, i32) {
    %c0_i32 = arith.constant 0 : i32
    %c0_i32_0 = arith.constant 0 : i32
    %c0_i32_1 = arith.constant 0 : i32
    return %c0_i32, %c0_i32_0 : i32, i32
  }
  func.func @transform_11(%arg0: i32) -> (i32, i32) {
    %c0_i32 = arith.constant 0 : i32
    %c0_i32_0 = arith.constant 0 : i32
    %c0_i32_1 = arith.constant 0 : i32
    return %c0_i32, %c0_i32_0 : i32, i32
  }
  func.func @transform_12(%arg0: i32) -> (i32, i32) {
    %c0_i32 = arith.constant 0 : i32
    %c0_i32_0 = arith.constant 0 : i32
    %c0_i32_1 = arith.constant 0 : i32
    return %c0_i32, %c0_i32_0 : i32, i32
  }
  func.func @transform_13(%arg0: i32) -> (i32, i32, i32) {
    %c0_i32 = arith.constant 0 : i32
    %c0_i32_0 = arith.constant 0 : i32
    %c0_i32_1 = arith.constant 0 : i32
    return %arg0, %c0_i32, %c0_i32_0 : i32, i32, i32
  }
}

</mosaic_0001>

<llo_original>
// kernel: tile.28
$region0: #{tile.28}
  #allocation0 [shape = 's32[1]{0}', space=sflag, size = 0x4, scoped, tag = 'scoped memory for tile.28']
  %s0 = inlined_call_operand.vmem [shape: f32[64], index: 0, kind: input, shape index: {}]
  %s1 = inlined_call_operand.vmem [shape: f32[3,64], index: 1, kind: output, shape index: {}]
  // Predicated region
  $region2: #{tile.28} parent=0 // pred_check
    _
  $region3: #{tile.28} parent=0 // pred_check_branch
    %3 = sbr.rel (0) target = $region5
  $region4: #{tile.28} parent=0 // pred_region
    _
  $region5: #{tile.28} parent=0 // pred_fallthru
    _
  %v4 = vld [vmem:[%s0] ss:$0 sm:$0xff]
  %5 = vst [vmem:[%s1] sm:$0xf] %v4

// kernel: tile.29
$region0: #{tile.29}
  %s0 = inlined_call_operand.vmem [shape: f32[3,64], index: 0, kind: input, shape index: {}]
  %s1 = inlined_call_operand.vmem [shape: f32[1,192], index: 1, kind: output, shape index: {}]
  $region1: #{tile.29} parent=0
    #allocation0 [shape = 'u8[8192]{0}', space=vmem, size = 0x2000, scoped, tag = 'scoped mem for output reshape']
    #allocation1 [shape = 'u8[4096]{0}', space=vmem, size = 0x1000, scoped, tag = 'scoped mem for input reshape']
    %s3 = sshllo.u32 0, 4
    %v4 = vld [vmem:[%s0] sm:%s3]
    %5 = vst [vmem:[#allocation1] sm:%s3] %v4
    %s6 = smov 3
    %v7 = vld [vmem:[#allocation1] ss:$2 sm:%s6]
    %vm8 = vcmask 523264
    %9 = vst.msk [vmem:[#allocation0] ss:$8 sm:$0x3] %vm8, %v7
    %s10 = scalar_lea.vmem [#allocation1], 1
    %v11 = vld [vmem:[%s10] sm:$0x1]
    %12 = vrot.lane.b32.xlu0 %v11, 64
    %v13 = vpop.permute.xlu0 %12
    %vm14 = vcmask 1048064
    %15 = vst.msk [vmem:[#allocation0] sm:$0x1] %vm14, %v13
    %s17 = sshllo.u32 0, 1
    %v19 = vld [vmem:[#allocation0] sm:%s17]
    %s20 = sshllo.u32 0, 1
    %21 = vst [vmem:[%s1] sm:%s20] %v19
    %s22 = scalar_lea.vmem [#allocation0], 8
    %v23 = vld [vmem:[%s22] sm:%s17]
    %s24 = sshllo.u32 0, 1
    %s25 = scalar_lea.vmem %s1, 1
    %26 = vst [vmem:[%s25] sm:%s24] %v23

// kernel: tile.43
$region0: #{tile.43}
  #allocation0 [shape = 's32[1]{0}', space=sflag, size = 0x4, scoped, tag = 'scoped memory for tile.43']
  %s0 = inlined_call_operand.vmem [shape: f32[32], index: 0, kind: input, shape index: {}]
  %s1 = inlined_call_operand.vmem [shape: f32[3,32], index: 1, kind: output, shape index: {}]
  // Predicated region
  $region2: #{tile.43} parent=0 // pred_check
    _
  $region3: #{tile.43} parent=0 // pred_check_branch
    %3 = sbr.rel (0) target = $region5
  $region4: #{tile.43} parent=0 // pred_region
    _
  $region5: #{tile.43} parent=0 // pred_fallthru
    _
  %v4 = vld [vmem:[%s0] ss:$0 sm:$0xff]
  %5 = vst [vmem:[%s1] sm:$0xf] %v4

// kernel: tile.44
$region0: #{tile.44}
  %s0 = inlined_call_operand.vmem [shape: f32[3,32], index: 0, kind: input, shape index: {}]
  %s1 = inlined_call_operand.vmem [shape: f32[1,96], index: 1, kind: output, shape index: {}]
  $region1: #{tile.44} parent=0
    #allocation0 [shape = 'u8[4096]{0}', space=vmem, size = 0x1000, scoped, tag = 'scoped mem for output reshape']
    #allocation1 [shape = 'u8[4096]{0}', space=vmem, size = 0x1000, scoped, tag = 'scoped mem for input reshape']
    %s3 = sshllo.u32 0, 4
    %v4 = vld [vmem:[%s0] sm:%s3]
    %5 = vst [vmem:[#allocation1] sm:%s3] %v4
    %v6 = vld [vmem:[#allocation1] sm:$0x1]
    %vm7 = vcmask 261120
    %8 = vst.msk [vmem:[#allocation0] sm:$0x1] %vm7, %v6
    %s9 = scalar_lea.vmem [#allocation1], 2
    %v10 = vld [vmem:[%s9] sm:$0x1]
    %11 = vrot.lane.b32.xlu0 %v10, 64
    %v12 = vpop.permute.xlu0 %11
    %vm13 = vcmask 785920
    %14 = vst.msk [vmem:[#allocation0] sm:$0x1] %vm13, %v12
    %s15 = scalar_lea.vmem [#allocation1], 1
    %v16 = vld [vmem:[%s15] sm:$0x1]
    %17 = vrot.lane.b32.xlu0 %v16, 32
    %v18 = vpop.permute.xlu0 %17
    %vm19 = vcmask 523520
    %20 = vst.msk [vmem:[#allocation0] sm:$0x1] %vm19, %v18
    %s22 = sshllo.u32 0, 1
    %v24 = vld [vmem:[#allocation0] sm:%s22]
    %s25 = sshllo.u32 0, 1
    %26 = vst [vmem:[%s1] sm:%s25] %v24

// kernel: eeg_forward.1
$region0: #{eeg_forward.1}
  #allocation0 [shape = 'u32[]', space=smem, size = 0x4, offset = 0x4, fixed_abs, tag = 'smem constant byte address 0x4 - core index']
  #allocation1 [shape = 'u32[144,128]{1,0:T(1,128)}', space=vmem, size = 0x12000, scoped, tag = 'internal scratch']
  #allocation2 [shape = 'f32[16,96]{1,0:T(8,128)}', space=vmem, size = 0x2000, scoped, tag = 'scratch operand']
  %s0 = inlined_call_operand.vmem [shape: f32[2,16,192], index: 0, kind: input, shape index: {}]
  %s1 = inlined_call_operand.vmem [shape: f32[1,192], index: 1, kind: input, shape index: {}]
  %s2 = inlined_call_operand.vmem [shape: f32[1,192], index: 2, kind: input, shape index: {}]
  %s3 = inlined_call_operand.vmem [shape: bf16[192,96], index: 3, kind: input, shape index: {}]
  %s4 = inlined_call_operand.vmem [shape: f32[1,96], index: 4, kind: input, shape index: {}]
  %s5 = inlined_call_operand.vmem [shape: f32[1,96], index: 5, kind: input, shape index: {}]
  %s6 = inlined_call_operand.vmem [shape: f32[1,96], index: 6, kind: input, shape index: {}]
  %s7 = inlined_call_operand.vmem [shape: bf16[3,96,512], index: 7, kind: input, shape index: {}]
  %s8 = inlined_call_operand.vmem [shape: f32[1,512], index: 8, kind: input, shape index: {}]
  %s9 = inlined_call_operand.vmem [shape: bf16[512,128], index: 9, kind: input, shape index: {}]
  %s10 = inlined_call_operand.vmem [shape: f32[1,128], index: 10, kind: input, shape index: {}]
  %s11 = inlined_call_operand.vmem [shape: bf16[128,32], index: 11, kind: input, shape index: {}]
  %s12 = inlined_call_operand.vmem [shape: f32[1,32], index: 12, kind: input, shape index: {}]
  %s13 = inlined_call_operand.vmem [shape: f32[2,14,32], index: 13, kind: output, shape index: {}]
  %s14 = sld [smem:[#allocation0]]
  $region85: #{eeg_forward.1} parent=0
    _
  %s16 = ssub.s32 1, %s14
  %s17 = scalar_select 0, %s16, %s14
  loop: start=0, step=1, limit=4
  $region2: #{eeg_forward.1} parent=0 // loop_pre_header
    _
  $region3: #{eeg_forward.1} parent=0 // loop_header
    %s19 = sphi 0, %s23
    %p20 = scmp.ge.s32.totalorder %s19, 4
    %s29 = sphi 0, %s31
    %s32 = sphi 0, %s29
    %s33 = sphi 0, %s32
    %s49 = sphi 0, %s33
    %s53 = sphi 0, %s53
    %s55 = sphi 0, %s53
    %s56 = sphi 0, %s55
    %s70 = sphi 0, %s56
    %s74 = sphi 0, %s74
    %s76 = sphi 0, %s74
    %s77 = sphi 0, %s76
    %s91 = sphi 0, %s77
    %s95 = sphi 0, %s95
    %s97 = sphi 0, %s95
    %s98 = sphi 0, %s97
    %s112 = sphi 0, %s98
    %s116 = sphi 0, %s116
    %s118 = sphi 0, %s116
    %s119 = sphi 0, %s118
    %s133 = sphi 0, %s119
    %s137 = sphi 0, %s137
    %s139 = sphi 0, %s137
    %s140 = sphi 0, %s139
    %s154 = sphi 0, %s140
    %s158 = sphi 0, %s158
    %s160 = sphi 0, %s158
    %s161 = sphi 0, %s160
    %s175 = sphi 0, %s161
    %s179 = sphi 0, %s179
    %s181 = sphi 0, %s179
    %s182 = sphi 0, %s181
    %s196 = sphi 0, %s182
    %s200 = sphi 0, %s200
    %s202 = sphi 0, %s200
    %s203 = sphi 0, %s202
    %s217 = sphi 0, %s203
    %s221 = sphi 0, %s221
    %s223 = sphi 0, %s221
    %s224 = sphi 0, %s223
    %s238 = sphi 0, %s224
    %s242 = sphi 0, %s242
    %s244 = sphi 0, %s242
    %s245 = sphi 0, %s244
    %s259 = sphi 0, %s245
    %s263 = sphi 0, %s263
    %s265 = sphi 0, %s263
    %s266 = sphi 0, %s265
    %s280 = sphi 0, %s266
    %s284 = sphi 0, %s284
    %s286 = sphi 0, %s284
    %s287 = sphi 0, %s286
    %s301 = sphi 0, %s287
    %s307 = sphi 0, %s309
    %s310 = sphi 0, %s307
    %s311 = sphi 0, %s310
    %s327 = sphi 0, %s311
  $region4: #{eeg_forward.1} parent=0 // loop_header_branch
    %22 = sbr.rel (%p20) target = $region8
  $region5: #{eeg_forward.1} parent=0 // loop_body
    %s24 = ssub.s32 %s19, 1
    %s25 = ssub.s32 %s19, 2
    %s26 = sadd.s32 %s19, 1
    %s27 = ssub.s32 %s19, %s26
    %p28 = scmp.eq.s32.totalorder %s27, 0
    %s30 = sadd.s32 %s29, 1
    %s31 = scalar_select %p28, %s29, %s30
    %p34 = pneg %p28
    %p35 = scmp.eq.s32.totalorder %s19, 1
    %p36 = por %p34, %p35
    %p37 = scmp.ne.s32.totalorder %s29, %s32
    %p38 = scmp.eq.s32.totalorder %s19, 0
    %p39 = por %p37, %p38
    %p40 = scmp.ne.s32.totalorder %s29, %s32
    %p41 = scmp.eq.s32.totalorder %s24, 1
    %p42 = por %p40, %p41
    %p43 = scmp.ne.s32.totalorder %s32, %s33
    %p44 = scmp.eq.s32.totalorder %s24, 0
    %p45 = por %p43, %p44
    %p46 = scmp.ne.s32.totalorder %s32, %s33
    %p47 = scmp.eq.s32.totalorder %s25, 1
    %p48 = por %p46, %p47
    %p50 = scmp.ne.s32.totalorder %s33, %s49
    %p51 = scmp.eq.s32.totalorder %s25, 0
    %p52 = por %p50, %p51
    %s54 = sadd.s32 %s53, 1
    %p57 = scmp.eq.s32.totalorder %s19, 1
    %p58 = scmp.ne.s32.totalorder %s53, %s55
    %p59 = scmp.eq.s32.totalorder %s19, 0
    %p60 = por %p58, %p59
    %p61 = scmp.ne.s32.totalorder %s53, %s55
    %p62 = scmp.eq.s32.totalorder %s24, 1
    %p63 = por %p61, %p62
    %p64 = scmp.ne.s32.totalorder %s55, %s56
    %p65 = scmp.eq.s32.totalorder %s24, 0
    %p66 = por %p64, %p65
    %p67 = scmp.ne.s32.totalorder %s55, %s56
    %p68 = scmp.eq.s32.totalorder %s25, 1
    %p69 = por %p67, %p68
    %p71 = scmp.ne.s32.totalorder %s56, %s70
    %p72 = scmp.eq.s32.totalorder %s25, 0
    %p73 = por %p71, %p72
    %s75 = sadd.s32 %s74, 1
    %p78 = scmp.eq.s32.totalorder %s19, 1
    %p79 = scmp.ne.s32.totalorder %s74, %s76
    %p80 = scmp.eq.s32.totalorder %s19, 0
    %p81 = por %p79, %p80
    %p82 = scmp.ne.s32.totalorder %s74, %s76
    %p83 = scmp.eq.s32.totalorder %s24, 1
    %p84 = por %p82, %p83
    %p85 = scmp.ne.s32.totalorder %s76, %s77
    %p86 = scmp.eq.s32.totalorder %s24, 0
    %p87 = por %p85, %p86
    %p88 = scmp.ne.s32.totalorder %s76, %s77
    %p89 = scmp.eq.s32.totalorder %s25, 1
    %p90 = por %p88, %p89
    %p92 = scmp.ne.s32.totalorder %s77, %s91
    %p93 = scmp.eq.s32.totalorder %s25, 0
    %p94 = por %p92, %p93
    %s96 = sadd.s32 %s95, 1
    %p99 = scmp.eq.s32.totalorder %s19, 1
    %p100 = scmp.ne.s32.totalorder %s95, %s97
    %p101 = scmp.eq.s32.totalorder %s19, 0
    %p102 = por %p100, %p101
    %p103 = scmp.ne.s32.totalorder %s95, %s97
    %p104 = scmp.eq.s32.totalorder %s24, 1
    %p105 = por %p103, %p104
    %p106 = scmp.ne.s32.totalorder %s97, %s98
    %p107 = scmp.eq.s32.totalorder %s24, 0
    %p108 = por %p106, %p107
    %p109 = scmp.ne.s32.totalorder %s97, %s98
    %p110 = scmp.eq.s32.totalorder %s25, 1
    %p111 = por %p109, %p110
    %p113 = scmp.ne.s32.totalorder %s98, %s112
    %p114 = scmp.eq.s32.totalorder %s25, 0
    %p115 = por %p113, %p114
    %s117 = sadd.s32 %s116, 1
    %p120 = scmp.eq.s32.totalorder %s19, 1
    %p121 = scmp.ne.s32.totalorder %s116, %s118
    %p122 = scmp.eq.s32.totalorder %s19, 0
    %p123 = por %p121, %p122
    %p124 = scmp.ne.s32.totalorder %s116, %s118
    %p125 = scmp.eq.s32.totalorder %s24, 1
    %p126 = por %p124, %p125
    %p127 = scmp.ne.s32.totalorder %s118, %s119
    %p128 = scmp.eq.s32.totalorder %s24, 0
    %p129 = por %p127, %p128
    %p130 = scmp.ne.s32.totalorder %s118, %s119
    %p131 = scmp.eq.s32.totalorder %s25, 1
    %p132 = por %p130, %p131
    %p134 = scmp.ne.s32.totalorder %s119, %s133
    %p135 = scmp.eq.s32.totalorder %s25, 0
    %p136 = por %p134, %p135
    %s138 = sadd.s32 %s137, 1
    %p141 = scmp.eq.s32.totalorder %s19, 1
    %p142 = scmp.ne.s32.totalorder %s137, %s139
    %p143 = scmp.eq.s32.totalorder %s19, 0
    %p144 = por %p142, %p143
    %p145 = scmp.ne.s32.totalorder %s137, %s139
    %p146 = scmp.eq.s32.totalorder %s24, 1
    %p147 = por %p145, %p146
    %p148 = scmp.ne.s32.totalorder %s139, %s140
    %p149 = scmp.eq.s32.totalorder %s24, 0
    %p150 = por %p148, %p149
    %p151 = scmp.ne.s32.totalorder %s139, %s140
    %p152 = scmp.eq.s32.totalorder %s25, 1
    %p153 = por %p151, %p152
    %p155 = scmp.ne.s32.totalorder %s140, %s154
    %p156 = scmp.eq.s32.totalorder %s25, 0
    %p157 = por %p155, %p156
    %s159 = sadd.s32 %s158, 1
    %p162 = scmp.eq.s32.totalorder %s19, 1
    %p163 = scmp.ne.s32.totalorder %s158, %s160
    %p164 = scmp.eq.s32.totalorder %s19, 0
    %p165 = por %p163, %p164
    %p166 = scmp.ne.s32.totalorder %s158, %s160
    %p167 = scmp.eq.s32.totalorder %s24, 1
    %p168 = por %p166, %p167
    %p169 = scmp.ne.s32.totalorder %s160, %s161
    %p170 = scmp.eq.s32.totalorder %s24, 0
    %p171 = por %p169, %p170
    %p172 = scmp.ne.s32.totalorder %s160, %s161
    %p173 = scmp.eq.s32.totalorder %s25, 1
    %p174 = por %p172, %p173
    %p176 = scmp.ne.s32.totalorder %s161, %s175
    %p177 = scmp.eq.s32.totalorder %s25, 0
    %p178 = por %p176, %p177
    %s180 = sadd.s32 %s179, 1
    %p183 = scmp.eq.s32.totalorder %s19, 1
    %p184 = scmp.ne.s32.totalorder %s179, %s181
    %p185 = scmp.eq.s32.totalorder %s19, 0
    %p186 = por %p184, %p185
    %p187 = scmp.ne.s32.totalorder %s179, %s181
    %p188 = scmp.eq.s32.totalorder %s24, 1
    %p189 = por %p187, %p188
    %p190 = scmp.ne.s32.totalorder %s181, %s182
    %p191 = scmp.eq.s32.totalorder %s24, 0
    %p192 = por %p190, %p191
    %p193 = scmp.ne.s32.totalorder %s181, %s182
    %p194 = scmp.eq.s32.totalorder %s25, 1
    %p195 = por %p193, %p194
    %p197 = scmp.ne.s32.totalorder %s182, %s196
    %p198 = scmp.eq.s32.totalorder %s25, 0
    %p199 = por %p197, %p198
    %s201 = sadd.s32 %s200, 1
    %p204 = scmp.eq.s32.totalorder %s19, 1
    %p205 = scmp.ne.s32.totalorder %s200, %s202
    %p206 = scmp.eq.s32.totalorder %s19, 0
    %p207 = por %p205, %p206
    %p208 = scmp.ne.s32.totalorder %s200, %s202
    %p209 = scmp.eq.s32.totalorder %s24, 1
    %p210 = por %p208, %p209
    %p211 = scmp.ne.s32.totalorder %s202, %s203
    %p212 = scmp.eq.s32.totalorder %s24, 0
    %p213 = por %p211, %p212
    %p214 = scmp.ne.s32.totalorder %s202, %s203
    %p215 = scmp.eq.s32.totalorder %s25, 1
    %p216 = por %p214, %p215
    %p218 = scmp.ne.s32.totalorder %s203, %s217
    %p219 = scmp.eq.s32.totalorder %s25, 0
    %p220 = por %p218, %p219
    %s222 = sadd.s32 %s221, 1
    %p225 = scmp.eq.s32.totalorder %s19, 1
    %p226 = scmp.ne.s32.totalorder %s221, %s223
    %p227 = scmp.eq.s32.totalorder %s19, 0
    %p228 = por %p226, %p227
    %p229 = scmp.ne.s32.totalorder %s221, %s223
    %p230 = scmp.eq.s32.totalorder %s24, 1
    %p231 = por %p229, %p230
    %p232 = scmp.ne.s32.totalorder %s223, %s224
    %p233 = scmp.eq.s32.totalorder %s24, 0
    %p234 = por %p232, %p233
    %p235 = scmp.ne.s32.totalorder %s223, %s224
    %p236 = scmp.eq.s32.totalorder %s25, 1
    %p237 = por %p235, %p236
    %p239 = scmp.ne.s32.totalorder %s224, %s238
    %p240 = scmp.eq.s32.totalorder %s25, 0
    %p241 = por %p239, %p240
    %s243 = sadd.s32 %s242, 1
    %p246 = scmp.eq.s32.totalorder %s19, 1
    %p247 = scmp.ne.s32.totalorder %s242, %s244
    %p248 = scmp.eq.s32.totalorder %s19, 0
    %p249 = por %p247, %p248
    %p250 = scmp.ne.s32.totalorder %s242, %s244
    %p251 = scmp.eq.s32.totalorder %s24, 1
    %p252 = por %p250, %p251
    %p253 = scmp.ne.s32.totalorder %s244, %s245
    %p254 = scmp.eq.s32.totalorder %s24, 0
    %p255 = por %p253, %p254
    %p256 = scmp.ne.s32.totalorder %s244, %s245
    %p257 = scmp.eq.s32.totalorder %s25, 1
    %p258 = por %p256, %p257
    %p260 = scmp.ne.s32.totalorder %s245, %s259
    %p261 = scmp.eq.s32.totalorder %s25, 0
    %p262 = por %p260, %p261
    %s264 = sadd.s32 %s263, 1
    %p267 = scmp.eq.s32.totalorder %s19, 1
    %p268 = scmp.ne.s32.totalorder %s263, %s265
    %p269 = scmp.eq.s32.totalorder %s19, 0
    %p270 = por %p268, %p269
    %p271 = scmp.ne.s32.totalorder %s263, %s265
    %p272 = scmp.eq.s32.totalorder %s24, 1
    %p273 = por %p271, %p272
    %p274 = scmp.ne.s32.totalorder %s265, %s266
    %p275 = scmp.eq.s32.totalorder %s24, 0
    %p276 = por %p274, %p275
    %p277 = scmp.ne.s32.totalorder %s265, %s266
    %p278 = scmp.eq.s32.totalorder %s25, 1
    %p279 = por %p277, %p278
    %p281 = scmp.ne.s32.totalorder %s266, %s280
    %p282 = scmp.eq.s32.totalorder %s25, 0
    %p283 = por %p281, %p282
    %s285 = sadd.s32 %s284, 1
    %p288 = scmp.eq.s32.totalorder %s19, 1
    %p289 = scmp.ne.s32.totalorder %s284, %s286
    %p290 = scmp.eq.s32.totalorder %s19, 0
    %p291 = por %p289, %p290
    %p292 = scmp.ne.s32.totalorder %s284, %s286
    %p293 = scmp.eq.s32.totalorder %s24, 1
    %p294 = por %p292, %p293
    %p295 = scmp.ne.s32.totalorder %s286, %s287
    %p296 = scmp.eq.s32.totalorder %s24, 0
    %p297 = por %p295, %p296
    %p298 = scmp.ne.s32.totalorder %s286, %s287
    %p299 = scmp.eq.s32.totalorder %s25, 1
    %p300 = por %p298, %p299
    %p302 = scmp.ne.s32.totalorder %s287, %s301
    %p303 = scmp.eq.s32.totalorder %s25, 0
    %p304 = por %p302, %p303
    %s305 = ssub.s32 %s19, %s26
    %p306 = scmp.eq.s32.totalorder %s305, 0
    %s308 = sadd.s32 %s307, 1
    %s309 = scalar_select %p306, %s307, %s308
    %p312 = pneg %p306
    %p313 = scmp.eq.s32.totalorder %s19, 1
    %p314 = por %p312, %p313
    %p315 = scmp.ne.s32.totalorder %s307, %s310
    %p316 = scmp.eq.s32.totalorder %s19, 0
    %p317 = por %p315, %p316
    %p318 = scmp.ne.s32.totalorder %s307, %s310
    %p319 = scmp.eq.s32.totalorder %s24, 1
    %p320 = por %p318, %p319
    %p321 = scmp.ne.s32.totalorder %s310, %s311
    %p322 = scmp.eq.s32.totalorder %s24, 0
    %p323 = por %p321, %p322
    %p324 = scmp.ne.s32.totalorder %s310, %s311
    %p325 = scmp.eq.s32.totalorder %s25, 1
    %p326 = por %p324, %p325
    %p328 = scmp.ne.s32.totalorder %s311, %s327
    %p329 = scmp.eq.s32.totalorder %s25, 0
    %p330 = por %p328, %p329
    %p331 = scmp.le.s32.totalorder 1, %s19
    %p332 = scmp.lt.s32.totalorder %s19, 3
    %p333 = pnand %p331, %p332
    %p334 = pneg %p333
    // Predicated region
    $region9: #{eeg_forward.1} parent=5 // pred_check
      _
    $region10: #{eeg_forward.1} parent=5 // pred_check_branch
      %336 = sbr.rel (%p333) target = $region12
    $region11: #{eeg_forward.1} parent=5 // pred_region
      %s337 = ssub.s32 %s19, 1
      // Predicated region
      $region13: #{eeg_forward.1} parent=11 // pred_check
        %p338 = pneg %p66
      $region14: #{eeg_forward.1} parent=11 // pred_check_branch
        %340 = sbr.rel (%p338) target = $region16
      $region15: #{eeg_forward.1} parent=11 // pred_region
        _
      $region16: #{eeg_forward.1} parent=11 // pred_fallthru
        _
      // Predicated region
      $region17: #{eeg_forward.1} parent=11 // pred_check
        %p341 = pneg %p87
      $region18: #{eeg_forward.1} parent=11 // pred_check_branch
        %343 = sbr.rel (%p341) target = $region20
      $region19: #{eeg_forward.1} parent=11 // pred_region
        _
      $region20: #{eeg_forward.1} parent=11 // pred_fallthru
        _
      // Predicated region
      $region21: #{eeg_forward.1} parent=11 // pred_check
        %p344 = pneg %p108
      $region22: #{eeg_forward.1} parent=11 // pred_check_branch
        %346 = sbr.rel (%p344) target = $region24
      $region23: #{eeg_forward.1} parent=11 // pred_region
        _
      $region24: #{eeg_forward.1} parent=11 // pred_fallthru
        _
      // Predicated region
      $region25: #{eeg_forward.1} parent=11 // pred_check
        %p347 = pneg %p129
      $region26: #{eeg_forward.1} parent=11 // pred_check_branch
        %349 = sbr.rel (%p347) target = $region28
      $region27: #{eeg_forward.1} parent=11 // pred_region
        _
      $region28: #{eeg_forward.1} parent=11 // pred_fallthru
        _
      // Predicated region
      $region29: #{eeg_forward.1} parent=11 // pred_check
        %p350 = pneg %p150
      $region30: #{eeg_forward.1} parent=11 // pred_check_branch
        %352 = sbr.rel (%p350) target = $region32
      $region31: #{eeg_forward.1} parent=11 // pred_region
        _
      $region32: #{eeg_forward.1} parent=11 // pred_fallthru
        _
      // Predicated region
      $region33: #{eeg_forward.1} parent=11 // pred_check
        %p353 = pneg %p171
      $region34: #{eeg_forward.1} parent=11 // pred_check_branch
        %355 = sbr.rel (%p353) target = $region36
      $region35: #{eeg_forward.1} parent=11 // pred_region
        _
      $region36: #{eeg_forward.1} parent=11 // pred_fallthru
        _
      // Predicated region
      $region37: #{eeg_forward.1} parent=11 // pred_check
        %p356 = pneg %p192
      $region38: #{eeg_forward.1} parent=11 // pred_check_branch
        %358 = sbr.rel (%p356) target = $region40
      $region39: #{eeg_forward.1} parent=11 // pred_region
        _
      $region40: #{eeg_forward.1} parent=11 // pred_fallthru
        _
      // Predicated region
      $region41: #{eeg_forward.1} parent=11 // pred_check
        %p359 = pneg %p213
      $region42: #{eeg_forward.1} parent=11 // pred_check_branch
        %361 = sbr.rel (%p359) target = $region44
      $region43: #{eeg_forward.1} parent=11 // pred_region
        _
      $region44: #{eeg_forward.1} parent=11 // pred_fallthru
        _
      // Predicated region
      $region45: #{eeg_forward.1} parent=11 // pred_check
        %p362 = pneg %p234
      $region46: #{eeg_forward.1} parent=11 // pred_check_branch
        %364 = sbr.rel (%p362) target = $region48
      $region47: #{eeg_forward.1} parent=11 // pred_region
        _
      $region48: #{eeg_forward.1} parent=11 // pred_fallthru
        _
      // Predicated region
      $region49: #{eeg_forward.1} parent=11 // pred_check
        %p365 = pneg %p255
      $region50: #{eeg_forward.1} parent=11 // pred_check_branch
        %367 = sbr.rel (%p365) target = $region52
      $region51: #{eeg_forward.1} parent=11 // pred_region
        _
      $region52: #{eeg_forward.1} parent=11 // pred_fallthru
        _
      // Predicated region
      $region53: #{eeg_forward.1} parent=11 // pred_check
        %p368 = pneg %p276
      $region54: #{eeg_forward.1} parent=11 // pred_check_branch
        %370 = sbr.rel (%p368) target = $region56
      $region55: #{eeg_forward.1} parent=11 // pred_region
        _
      $region56: #{eeg_forward.1} parent=11 // pred_fallthru
        _
      // Predicated region
      $region57: #{eeg_forward.1} parent=11 // pred_check
        %p371 = pneg %p297
      $region58: #{eeg_forward.1} parent=11 // pred_check_branch
        %373 = sbr.rel (%p371) target = $region60
      $region59: #{eeg_forward.1} parent=11 // pred_region
        _
      $region60: #{eeg_forward.1} parent=11 // pred_fallthru
        _
    $region12: #{eeg_forward.1} parent=5 // pred_fallthru
      _
    %p374 = scmp.lt.s32.totalorder %s19, 2
    // Predicated region
    $region61: #{eeg_forward.1} parent=5 // pred_check
      %p375 = pneg %p374
    $region62: #{eeg_forward.1} parent=5 // pred_check_branch
      %377 = sbr.rel (%p375) target = $region64
    $region63: #{eeg_forward.1} parent=5 // pred_region
      // Predicated region
      $region65: #{eeg_forward.1} parent=63 // pred_check
        %p378 = pneg %p39
      $region66: #{eeg_forward.1} parent=63 // pred_check_branch
        %380 = sbr.rel (%p378) target = $region68
      $region67: #{eeg_forward.1} parent=63 // pred_region
        %p381 = scmp.lt.s32.totalorder %s19, 1
        %s382 = scalar_select %p381, %s19, 1
        %s383 = smul.addr %s382, 4
        %s384 = smul.addr %s383, 8
        %s385 = scalar_lea.vmem %s0, %s384
      $region68: #{eeg_forward.1} parent=63 // pred_fallthru
        _
    $region64: #{eeg_forward.1} parent=5 // pred_fallthru
      _
    %p386 = scmp.le.s32.totalorder 1, %s19
    %p387 = scmp.lt.s32.totalorder %s19, 3
    %p388 = pnand %p386, %p387
    %p389 = pneg %p388
    // Predicated region
    $region69: #{eeg_forward.1} parent=5 // pred_check
      _
    $region70: #{eeg_forward.1} parent=5 // pred_check_branch
      %391 = sbr.rel (%p388) target = $region72
    $region71: #{eeg_forward.1} parent=5 // pred_region
      %s392 = ssub.s32 %s19, 1
      %p393 = scmp.lt.s32.totalorder %s24, 1
      %s394 = scalar_select %p393, %s24, 1
      %s395 = smul.addr %s394, 4
      %s396 = smul.addr %s395, 8
      %s397 = scalar_lea.vmem %s0, %s396
      %p398 = pneg %p45
      %p399 = pneg %p42
      %p400 = pneg %p66
      %p401 = pneg %p63
      %p402 = pneg %p87
      %p403 = pneg %p84
      %p404 = pneg %p108
      %p405 = pneg %p105
      %p406 = pneg %p129
      %p407 = pneg %p126
      %p408 = pneg %p150
      %p409 = pneg %p147
      %p410 = pneg %p171
      %p411 = pneg %p168
      %p412 = pneg %p192
      %p413 = pneg %p189
      %p414 = pneg %p213
      %p415 = pneg %p210
      %p416 = pneg %p234
      %p417 = pneg %p231
      %p418 = pneg %p255
      %p419 = pneg %p252
      %p420 = pneg %p276
      %p421 = pneg %p273
      %p422 = pneg %p297
      %p423 = pneg %p294
      %p424 = pneg %p323
      %p425 = pneg %p320
      %p426 = scmp.lt.s32.totalorder %s24, 1
      %s427 = scalar_select %p426, %s24, 1
      %s428 = smul.addr %s427, 2
      %s429 = smul.addr %s428, 8
      %s430 = scalar_lea.vmem %s13, %s429
      %p431 = scmp.lt.s32.totalorder %s24, 1
      %s432 = scalar_select %p431, %s24, 1
      %s433 = smul.addr %s432, 4
      %s434 = smul.addr %s433, 8
      %s435 = scalar_lea.vmem %s0, %s434
      %p436 = scmp.lt.s32.totalorder %s24, 1
      %s437 = scalar_select %p436, %s24, 1
      %s438 = smul.addr %s437, 2
      %s439 = smul.addr %s438, 8
      %s440 = scalar_lea.vmem %s13, %s439
      %v442 = vld [vmem:[%s435] sm:$0xff]
      %v443 = vld [vmem:[%s435 + $0x8] sm:$0xff]
      %v444 = vld [vmem:[%s435 + $0x10] sm:$0xff]
      %v445 = vld [vmem:[%s435 + $0x18] sm:$0xff]
      %v446 = vld [vmem:[%s1] sm:$0x3]
      %v448 = vlaneseq
      %v449 = vshrl.u32 %v448, 7
      %v450 = vsub.s32 0, %v449
      %v451 = vrot.slane %v446, %v450
      %v452 = vlaneseq
      %v453 = vshrl.u32 %v452, 7
      %v454 = vsub.s32 1, %v453
      %v455 = vrot.slane %v446, %v454
      %v458 = vmul.f32 %v442, %v451
      %v459 = vmul.f32 %v443, %v455
      %v460 = vmul.f32 %v444, %v451
      %v461 = vmul.f32 %v445, %v455
      %v462 = vld [vmem:[%s2] sm:$0x3]
      %v464 = vlaneseq
      %v465 = vshrl.u32 %v464, 7
      %v466 = vsub.s32 0, %v465
      %v467 = vrot.slane %v462, %v466
      %v468 = vlaneseq
      %v469 = vshrl.u32 %v468, 7
      %v470 = vsub.s32 1, %v469
      %v471 = vrot.slane %v462, %v470
      %v474 = vadd.f32 %v458, %v467
      %v475 = vadd.f32 %v459, %v471
      %v476 = vadd.f32 %v460, %v467
      %v477 = vadd.f32 %v461, %v471
      %v478 = vpack.c.bf16 %v476, %v474
      %v479 = vpack.c.bf16 %v477, %v475
      %v480 = vld [vmem:[%s3] sm:$0xf]
      %v481 = vld [vmem:[%s3 + $0x4] sm:$0xf]
      %v482 = vld [vmem:[%s3 + $0x8] sm:$0xf]
      %v483 = vld [vmem:[%s3 + $0xc] sm:$0xf]
      %v484 = vld [vmem:[%s3 + $0x10] sm:$0xf]
      %v485 = vld [vmem:[%s3 + $0x14] sm:$0xf]
      %v486 = vld [vmem:[%s3 + $0x18] sm:$0xf]
      %v487 = vld [vmem:[%s3 + $0x1c] sm:$0xf]
      %v488 = vld [vmem:[%s3 + $0x20] sm:$0xf]
      %v489 = vld [vmem:[%s3 + $0x24] sm:$0xf]
      %v490 = vld [vmem:[%s3 + $0x28] sm:$0xf]
      %v491 = vld [vmem:[%s3 + $0x2c] sm:$0xf]
      %v492 = vld [vmem:[%s3 + $0x30] sm:$0xf]
      %v493 = vld [vmem:[%s3 + $0x34] sm:$0xf]
      %v494 = vld [vmem:[%s3 + $0x38] sm:$0xf]
      %v495 = vld [vmem:[%s3 + $0x3c] sm:$0xf]
      %v496 = vld [vmem:[%s3 + $0x40] sm:$0xf]
      %v497 = vld [vmem:[%s3 + $0x44] sm:$0xf]
      %v498 = vld [vmem:[%s3 + $0x48] sm:$0xf]
      %v499 = vld [vmem:[%s3 + $0x4c] sm:$0xf]
      %v500 = vld [vmem:[%s3 + $0x50] sm:$0xf]
      %v501 = vld [vmem:[%s3 + $0x54] sm:$0xf]
      %v502 = vld [vmem:[%s3 + $0x58] sm:$0xf]
      %v503 = vld [vmem:[%s3 + $0x5c] sm:$0xf]
      %v504 = vld [vmem:[%s4] sm:$0x1]
      %v506 = vlaneseq
      %v507 = vshrl.u32 %v506, 7
      %v508 = vsub.s32 0, %v507
      %v509 = vrot.slane %v504, %v508
      %v535 = vunpack.c.l.b16 %v480
      %v536 = vunpack.c.l.b16 %v481
      %v537 = vunpack.c.l.b16 %v482
      %v538 = vunpack.c.l.b16 %v483
      %v539 = vunpack.c.l.b16 %v484
      %v540 = vunpack.c.l.b16 %v485
      %v541 = vunpack.c.l.b16 %v486
      %v542 = vunpack.c.l.b16 %v487
      %v543 = vunpack.c.l.b16 %v488
      %v544 = vunpack.c.l.b16 %v489
      %v545 = vunpack.c.l.b16 %v490
      %v546 = vunpack.c.l.b16 %v491
      %v547 = vunpack.c.l.b16 %v492
      %v548 = vunpack.c.l.b16 %v493
      %v549 = vunpack.c.l.b16 %v494
      %v550 = vunpack.c.l.b16 %v495
      %v551 = vunpack.c.l.b16 %v496
      %v552 = vunpack.c.l.b16 %v497
      %v553 = vunpack.c.l.b16 %v498
      %v554 = vunpack.c.l.b16 %v499
      %v555 = vunpack.c.l.b16 %v500
      %v556 = vunpack.c.l.b16 %v501
      %v557 = vunpack.c.l.b16 %v502
      %v558 = vunpack.c.l.b16 %v503
      %v559 = vpack.c.b16 %v536, %v535
      %v560 = vpack.c.b16 %v538, %v537
      %v561 = vpack.c.b16 %v540, %v539
      %v562 = vpack.c.b16 %v542, %v541
      %v563 = vpack.c.b16 %v544, %v543
      %v564 = vpack.c.b16 %v546, %v545
      %v565 = vpack.c.b16 %v548, %v547
      %v566 = vpack.c.b16 %v550, %v549
      %v567 = vpack.c.b16 %v552, %v551
      %v568 = vpack.c.b16 %v554, %v553
      %v569 = vpack.c.b16 %v556, %v555
      %v570 = vpack.c.b16 %v558, %v557
      %vm583 = vcmask 523264
      %v585 = vsel %vm583, %v479, 0
      %587 = vmatprep.subr.bf16.mxu0 0
      %588 = vmatpush1.bf16.msra.mxu0 %v559
      %589 = vmatprep.subr.bf16.mxu0 0
      %590 = vmatpush1.bf16.msra.mxu0 %v560
      %591 = vmatprep.subr.bf16.mxu0 0
      %592 = vmatpush1.bf16.msra.mxu0 %v561
      %593 = vmatprep.subr.bf16.mxu0 0
      %594 = vmatpush1.bf16.msra.mxu0 %v562
      %595 = vmatprep.subr.bf16.mxu0 0
      %596 = vmatpush1.bf16.msra.mxu0 %v563
      %597 = vmatprep.subr.bf16.mxu0 0
      %598 = vmatpush1.bf16.msra.mxu0 %v564
      %599 = vmatprep.subr.bf16.mxu0 0
      %600 = vmatpush1.bf16.msra.mxu0 %v565
      %601 = vmatprep.subr.bf16.mxu0 0
      %602 = vmatpush1.bf16.msra.mxu0 %v566
      %603 = vmatprep.subr.bf16.mxu0 0
      %604 = vmatpush1.bf16.msra.mxu0 %v567
      %605 = vmatprep.subr.bf16.mxu0 0
      %606 = vmatpush1.bf16.msra.mxu0 %v568
      %607 = vmatprep.subr.bf16.mxu0 0
      %608 = vmatpush1.bf16.msra.mxu0 %v569
      %609 = vmatprep.subr.bf16.mxu0 0
      %610 = vmatpush1.bf16.msra.mxu0 %v570
      %611 = vmatprep.subr.bf16.mxu0 0
      %612 = vmatpush1.bf16.msra.mxu0 0
      %613 = vmatprep.subr.bf16.mxu0 0
      %614 = vmatpush1.bf16.msra.mxu0 0
      %615 = vmatprep.subr.bf16.mxu0 0
      %616 = vmatpush1.bf16.msra.mxu0 0
      %617 = vmatprep.subr.bf16.mxu0 0
      %618 = vmatpush1.bf16.msra.mxu0 0
      %619 = vmatprep.mubr.bf16.mxu0 %v585
      %620 = vmatmul.mubr.bf16.gmra.mrb[0].mxu0 %v478
      %v621 = vpop.f32.mrb[0].mxu0
      %v622 = vadd.f32 %v509, %v621
      %v623 = vpop.f32.mrb[0].mxu0
      %v624 = vpop.f32.mrb[0].mxu0
      %v625 = vadd.f32 %v509, %v624
      %v626 = vpop.f32.mrb[0].mxu0
      %627 = vdwg.mxu0
      %v628 = vmax.f32 %v622, 0.0
      %v629 = vmax.f32 %v625, 0.0
      %v630 = vld [vmem:[%s5] sm:$0x1]
      %v632 = vlaneseq
      %v633 = vshrl.u32 %v632, 7
      %v634 = vsub.s32 0, %v633
      %v635 = vrot.slane %v630, %v634
      %v637 = vmul.f32 %v628, %v635
      %v638 = vmul.f32 %v629, %v635
      %v639 = vld [vmem:[%s6] sm:$0x1]
      %v641 = vlaneseq
      %v642 = vshrl.u32 %v641, 7
      %v643 = vsub.s32 0, %v642
      %v644 = vrot.slane %v639, %v643
      %v646 = vadd.f32 %v637, %v644
      %v647 = vadd.f32 %v638, %v644
      %vm648 = vcmask 785408
      %649 = vst.msk [vmem:[#allocation2] sm:$0xff] %vm648, %v646
      %650 = vst.msk [vmem:[#allocation2 + $0x8] sm:$0xff] %vm648, %v647
      %v651 = vld [vmem:[#allocation2] sm:$0xff]
      %v652 = vld [vmem:[#allocation2 + $0x8] sm:$0x3f]
      %v653 = vpack.c.bf16 %v652, %v651
      %v654 = vld [vmem:[%s7] sm:$0xff]
      %v655 = vld [vmem:[%s7 + $0x8] sm:$0xff]
      %v656 = vld [vmem:[%s7 + $0x10] sm:$0xff]
      %v657 = vld [vmem:[%s7 + $0x18] sm:$0xff]
      %v658 = vld [vmem:[%s7 + $0x20] sm:$0xff]
      %v659 = vld [vmem:[%s7 + $0x28] sm:$0xff]
      %v660 = vld [vmem:[%s7 + $0x30] sm:$0xff]
      %v661 = vld [vmem:[%s7 + $0x38] sm:$0xff]
      %v662 = vld [vmem:[%s7 + $0x40] sm:$0xff]
      %v663 = vld [vmem:[%s7 + $0x48] sm:$0xff]
      %v664 = vld [vmem:[%s7 + $0x50] sm:$0xff]
      %v665 = vld [vmem:[%s7 + $0x58] sm:$0xff]
      %v666 = vld [vmem:[%s7 + $0x60] sm:$0xff]
      %v667 = vld [vmem:[%s7 + $0x68] sm:$0xff]
      %v668 = vld [vmem:[%s7 + $0x70] sm:$0xff]
      %v669 = vld [vmem:[%s7 + $0x78] sm:$0xff]
      %v670 = vld [vmem:[%s7 + $0x80] sm:$0xff]
      %v671 = vld [vmem:[%s7 + $0x88] sm:$0xff]
      %v672 = vld [vmem:[%s7 + $0x90] sm:$0xff]
      %v673 = vld [vmem:[%s7 + $0x98] sm:$0xff]
      %v674 = vld [vmem:[%s7 + $0xa0] sm:$0xff]
      %v675 = vld [vmem:[%s7 + $0xa8] sm:$0xff]
      %v676 = vld [vmem:[%s7 + $0xb0] sm:$0xff]
      %v677 = vld [vmem:[%s7 + $0xb8] sm:$0xff]
      %v678 = vld [vmem:[#allocation2 + $0x1] sm:$0xff]
      %v679 = vld [vmem:[#allocation2 + $0x9] sm:$0x3f]
      %v680 = vpack.c.bf16 %v679, %v678
      %s681 = scalar_lea.vmem %s7, 192
      %v682 = vld [vmem:[%s681] sm:$0xff]
      %v683 = vld [vmem:[%s681 + $0x8] sm:$0xff]
      %v684 = vld [vmem:[%s681 + $0x10] sm:$0xff]
      %v685 = vld [vmem:[%s681 + $0x18] sm:$0xff]
      %v686 = vld [vmem:[%s681 + $0x20] sm:$0xff]
      %v687 = vld [vmem:[%s681 + $0x28] sm:$0xff]
      %v688 = vld [vmem:[%s681 + $0x30] sm:$0xff]
      %v689 = vld [vmem:[%s681 + $0x38] sm:$0xff]
      %v690 = vld [vmem:[%s681 + $0x40] sm:$0xff]
      %v691 = vld [vmem:[%s681 + $0x48] sm:$0xff]
      %v692 = vld [vmem:[%s681 + $0x50] sm:$0xff]
      %v693 = vld [vmem:[%s681 + $0x58] sm:$0xff]
      %v694 = vld [vmem:[%s681 + $0x60] sm:$0xff]
      %v695 = vld [vmem:[%s681 + $0x68] sm:$0xff]
      %v696 = vld [vmem:[%s681 + $0x70] sm:$0xff]
      %v697 = vld [vmem:[%s681 + $0x78] sm:$0xff]
      %v698 = vld [vmem:[%s681 + $0x80] sm:$0xff]
      %v699 = vld [vmem:[%s681 + $0x88] sm:$0xff]
      %v700 = vld [vmem:[%s681 + $0x90] sm:$0xff]
      %v701 = vld [vmem:[%s681 + $0x98] sm:$0xff]
      %v702 = vld [vmem:[%s681 + $0xa0] sm:$0xff]
      %v703 = vld [vmem:[%s681 + $0xa8] sm:$0xff]
      %v704 = vld [vmem:[%s681 + $0xb0] sm:$0xff]
      %v705 = vld [vmem:[%s681 + $0xb8] sm:$0xff]
      %v730 = vunpack.c.l.b16 %v682
      %v731 = vunpack.c.h.b16 %v682
      %v732 = vunpack.c.l.b16 %v683
      %v733 = vunpack.c.h.b16 %v683
      %v734 = vunpack.c.l.b16 %v684
      %v735 = vunpack.c.h.b16 %v684
      %v736 = vunpack.c.l.b16 %v685
      %v737 = vunpack.c.h.b16 %v685
      %v738 = vunpack.c.l.b16 %v686
      %v739 = vunpack.c.h.b16 %v686
      %v740 = vunpack.c.l.b16 %v687
      %v741 = vunpack.c.h.b16 %v687
      %v742 = vunpack.c.l.b16 %v688
      %v743 = vunpack.c.h.b16 %v688
      %v744 = vunpack.c.l.b16 %v689
      %v745 = vunpack.c.h.b16 %v689
      %v746 = vunpack.c.l.b16 %v690
      %v747 = vunpack.c.h.b16 %v690
      %v748 = vunpack.c.l.b16 %v691
      %v749 = vunpack.c.h.b16 %v691
      %v750 = vunpack.c.l.b16 %v692
      %v751 = vunpack.c.h.b16 %v692
      %v752 = vunpack.c.l.b16 %v693
      %v753 = vunpack.c.h.b16 %v693
      %v754 = vunpack.c.l.b16 %v694
      %v755 = vunpack.c.h.b16 %v694
      %v756 = vunpack.c.l.b16 %v695
      %v757 = vunpack.c.h.b16 %v695
      %v758 = vunpack.c.l.b16 %v696
      %v759 = vunpack.c.h.b16 %v696
      %v760 = vunpack.c.l.b16 %v697
      %v761 = vunpack.c.h.b16 %v697
      %v762 = vunpack.c.l.b16 %v698
      %v763 = vunpack.c.h.b16 %v698
      %v764 = vunpack.c.l.b16 %v699
      %v765 = vunpack.c.h.b16 %v699
      %v766 = vunpack.c.l.b16 %v700
      %v767 = vunpack.c.h.b16 %v700
      %v768 = vunpack.c.l.b16 %v701
      %v769 = vunpack.c.h.b16 %v701
      %v770 = vunpack.c.l.b16 %v702
      %v771 = vunpack.c.h.b16 %v702
      %v772 = vunpack.c.l.b16 %v703
      %v773 = vunpack.c.h.b16 %v703
      %v774 = vunpack.c.l.b16 %v704
      %v775 = vunpack.c.h.b16 %v704
      %v776 = vunpack.c.l.b16 %v705
      %v777 = vunpack.c.h.b16 %v705
      %v778 = vpack.c.b16 %v734, %v730
      %v779 = vpack.c.b16 %v735, %v731
      %v780 = vpack.c.b16 %v736, %v732
      %v781 = vpack.c.b16 %v737, %v733
      %v782 = vpack.c.b16 %v742, %v738
      %v783 = vpack.c.b16 %v743, %v739
      %v784 = vpack.c.b16 %v744, %v740
      %v785 = vpack.c.b16 %v745, %v741
      %v786 = vpack.c.b16 %v750, %v746
      %v787 = vpack.c.b16 %v751, %v747
      %v788 = vpack.c.b16 %v752, %v748
      %v789 = vpack.c.b16 %v753, %v749
      %v790 = vpack.c.b16 %v758, %v754
      %v791 = vpack.c.b16 %v759, %v755
      %v792 = vpack.c.b16 %v760, %v756
      %v793 = vpack.c.b16 %v761, %v757
      %v794 = vpack.c.b16 %v766, %v762
      %v795 = vpack.c.b16 %v767, %v763
      %v796 = vpack.c.b16 %v768, %v764
      %v797 = vpack.c.b16 %v769, %v765
      %v798 = vpack.c.b16 %v774, %v770
      %v799 = vpack.c.b16 %v775, %v771
      %v800 = vpack.c.b16 %v776, %v772
      %v801 = vpack.c.b16 %v777, %v773
      %v827 = vsel %vm648, %v680, 0
      %829 = vmatprep.subr.bf16.mxu0 %v779
      %830 = vmatpush1.bf16.msra.mxu0 %v778
      %831 = vmatprep.subr.bf16.mxu0 %v783
      %832 = vmatpush1.bf16.msra.mxu0 %v782
      %833 = vmatprep.subr.bf16.mxu0 %v787
      %834 = vmatpush1.bf16.msra.mxu0 %v786
      %835 = vmatprep.subr.bf16.mxu0 %v791
      %836 = vmatpush1.bf16.msra.mxu0 %v790
      %837 = vmatprep.subr.bf16.mxu0 %v795
      %838 = vmatpush1.bf16.msra.mxu0 %v794
      %839 = vmatprep.subr.bf16.mxu0 %v799
      %840 = vmatpush1.bf16.msra.mxu0 %v798
      %841 = vmatprep.subr.bf16.mxu0 0
      %842 = vmatpush1.bf16.msra.mxu0 0
      %843 = vmatprep.subr.bf16.mxu0 0
      %844 = vmatpush1.bf16.msra.mxu0 0
      %845 = vmatprep.subr.bf16.mxu0 0
      %846 = vmatpush1.bf16.msra.mxu0 0
      %847 = vmatprep.subr.bf16.mxu0 0
      %848 = vmatpush1.bf16.msra.mxu0 0
      %849 = vmatprep.subr.bf16.mxu0 0
      %850 = vmatpush1.bf16.msra.mxu0 0
      %851 = vmatprep.subr.bf16.mxu0 0
      %852 = vmatpush1.bf16.msra.mxu0 0
      %853 = vmatprep.subr.bf16.mxu0 0
      %854 = vmatpush1.bf16.msra.mxu0 0
      %855 = vmatprep.subr.bf16.mxu0 0
      %856 = vmatpush1.bf16.msra.mxu0 0
      %857 = vmatprep.subr.bf16.mxu0 0
      %858 = vmatpush1.bf16.msra.mxu0 0
      %859 = vmatprep.subr.bf16.mxu0 0
      %860 = vmatpush1.bf16.msra.mxu0 0
      %861 = vmatprep.mubr.bf16.mxu0 0
      %862 = vmatmul.mubr.bf16.gmra.mrb[0].mxu0 %v827
      %v863 = vpop.f32.mrb[0].mxu0
      %v864 = vadd.f32 0.0, %v863
      %v865 = vpop.f32.mrb[0].mxu0
      %v866 = vadd.f32 0.0, %v865
      %v867 = vpop.f32.mrb[0].mxu0
      %v868 = vadd.f32 0.0, %v867
      %v869 = vpop.f32.mrb[0].mxu0
      %v870 = vadd.f32 0.0, %v869
      %871 = vdwg.mxu0
      %872 = vmatprep.subr.bf16.mxu0 %v781
      %873 = vmatpush1.bf16.msra.mxu0 %v780
      %874 = vmatprep.subr.bf16.mxu0 %v785
      %875 = vmatpush1.bf16.msra.mxu0 %v784
      %876 = vmatprep.subr.bf16.mxu0 %v789
      %877 = vmatpush1.bf16.msra.mxu0 %v788
      %878 = vmatprep.subr.bf16.mxu0 %v793
      %879 = vmatpush1.bf16.msra.mxu0 %v792
      %880 = vmatprep.subr.bf16.mxu0 %v797
      %881 = vmatpush1.bf16.msra.mxu0 %v796
      %882 = vmatprep.subr.bf16.mxu0 %v801
      %883 = vmatpush1.bf16.msra.mxu0 %v800
      %884 = vmatprep.subr.bf16.mxu0 0
      %885 = vmatpush1.bf16.msra.mxu0 0
      %886 = vmatprep.subr.bf16.mxu0 0
      %887 = vmatpush1.bf16.msra.mxu0 0
      %888 = vmatprep.subr.bf16.mxu0 0
      %889 = vmatpush1.bf16.msra.mxu0 0
      %890 = vmatprep.subr.bf16.mxu0 0
      %891 = vmatpush1.bf16.msra.mxu0 0
      %892 = vmatprep.subr.bf16.mxu0 0
      %893 = vmatpush1.bf16.msra.mxu0 0
      %894 = vmatprep.subr.bf16.mxu0 0
      %895 = vmatpush1.bf16.msra.mxu0 0
      %896 = vmatprep.subr.bf16.mxu0 0
      %897 = vmatpush1.bf16.msra.mxu0 0
      %898 = vmatprep.subr.bf16.mxu0 0
      %899 = vmatpush1.bf16.msra.mxu0 0
      %900 = vmatprep.subr.bf16.mxu0 0
      %901 = vmatpush1.bf16.msra.mxu0 0
      %902 = vmatprep.subr.bf16.mxu0 0
      %903 = vmatpush1.bf16.msra.mxu0 0
      %904 = vmatprep.mubr.bf16.mxu0 0
      %905 = vmatmul.mubr.bf16.gmra.mrb[0].mxu0 %v827
      %v906 = vpop.f32.mrb[0].mxu0
      %v907 = vadd.f32 0.0, %v906
      %v908 = vpop.f32.mrb[0].mxu0
      %v909 = vadd.f32 0.0, %v908
      %v910 = vpop.f32.mrb[0].mxu0
      %v911 = vadd.f32 0.0, %v910
      %v912 = vpop.f32.mrb[0].mxu0
      %v913 = vadd.f32 0.0, %v912
      %914 = vdwg.mxu0
      %v939 = vunpack.c.l.b16 %v654
      %v940 = vunpack.c.h.b16 %v654
      %v941 = vunpack.c.l.b16 %v655
      %v942 = vunpack.c.h.b16 %v655
      %v943 = vunpack.c.l.b16 %v656
      %v944 = vunpack.c.h.b16 %v656
      %v945 = vunpack.c.l.b16 %v657
      %v946 = vunpack.c.h.b16 %v657
      %v947 = vunpack.c.l.b16 %v658
      %v948 = vunpack.c.h.b16 %v658
      %v949 = vunpack.c.l.b16 %v659
      %v950 = vunpack.c.h.b16 %v659
      %v951 = vunpack.c.l.b16 %v660
      %v952 = vunpack.c.h.b16 %v660
      %v953 = vunpack.c.l.b16 %v661
      %v954 = vunpack.c.h.b16 %v661
      %v955 = vunpack.c.l.b16 %v662
      %v956 = vunpack.c.h.b16 %v662
      %v957 = vunpack.c.l.b16 %v663
      %v958 = vunpack.c.h.b16 %v663
      %v959 = vunpack.c.l.b16 %v664
      %v960 = vunpack.c.h.b16 %v664
      %v961 = vunpack.c.l.b16 %v665
      %v962 = vunpack.c.h.b16 %v665
      %v963 = vunpack.c.l.b16 %v666
      %v964 = vunpack.c.h.b16 %v666
      %v965 = vunpack.c.l.b16 %v667
      %v966 = vunpack.c.h.b16 %v667
      %v967 = vunpack.c.l.b16 %v668
      %v968 = vunpack.c.h.b16 %v668
      %v969 = vunpack.c.l.b16 %v669
      %v970 = vunpack.c.h.b16 %v669
      %v971 = vunpack.c.l.b16 %v670
      %v972 = vunpack.c.h.b16 %v670
      %v973 = vunpack.c.l.b16 %v671
      %v974 = vunpack.c.h.b16 %v671
      %v975 = vunpack.c.l.b16 %v672
      %v976 = vunpack.c.h.b16 %v672
      %v977 = vunpack.c.l.b16 %v673
      %v978 = vunpack.c.h.b16 %v673
      %v979 = vunpack.c.l.b16 %v674
      %v980 = vunpack.c.h.b16 %v674
      %v981 = vunpack.c.l.b16 %v675
      %v982 = vunpack.c.h.b16 %v675
      %v983 = vunpack.c.l.b16 %v676
      %v984 = vunpack.c.h.b16 %v676
      %v985 = vunpack.c.l.b16 %v677
      %v986 = vunpack.c.h.b16 %v677
      %v987 = vpack.c.b16 %v943, %v939
      %v988 = vpack.c.b16 %v944, %v940
      %v989 = vpack.c.b16 %v945, %v941
      %v990 = vpack.c.b16 %v946, %v942
      %v991 = vpack.c.b16 %v951, %v947
      %v992 = vpack.c.b16 %v952, %v948
      %v993 = vpack.c.b16 %v953, %v949
      %v994 = vpack.c.b16 %v954, %v950
      %v995 = vpack.c.b16 %v959, %v955
      %v996 = vpack.c.b16 %v960, %v956
      %v997 = vpack.c.b16 %v961, %v957
      %v998 = vpack.c.b16 %v962, %v958
      %v999 = vpack.c.b16 %v967, %v963
      %v1000 = vpack.c.b16 %v968, %v964
      %v1001 = vpack.c.b16 %v969, %v965
      %v1002 = vpack.c.b16 %v970, %v966
      %v1003 = vpack.c.b16 %v975, %v971
      %v1004 = vpack.c.b16 %v976, %v972
      %v1005 = vpack.c.b16 %v977, %v973
      %v1006 = vpack.c.b16 %v978, %v974
      %v1007 = vpack.c.b16 %v983, %v979
      %v1008 = vpack.c.b16 %v984, %v980
      %v1009 = vpack.c.b16 %v985, %v981
      %v1010 = vpack.c.b16 %v986, %v982
      %v1036 = vsel %vm648, %v653, 0
      %1038 = vmatprep.subr.bf16.mxu0 %v988
      %1039 = vmatpush1.bf16.msra.mxu0 %v987
      %1040 = vmatprep.subr.bf16.mxu0 %v992
      %1041 = vmatpush1.bf16.msra.mxu0 %v991
      %1042 = vmatprep.subr.bf16.mxu0 %v996
      %1043 = vmatpush1.bf16.msra.mxu0 %v995
      %1044 = vmatprep.subr.bf16.mxu0 %v1000
      %1045 = vmatpush1.bf16.msra.mxu0 %v999
      %1046 = vmatprep.subr.bf16.mxu0 %v1004
      %1047 = vmatpush1.bf16.msra.mxu0 %v1003
      %1048 = vmatprep.subr.bf16.mxu0 %v1008
      %1049 = vmatpush1.bf16.msra.mxu0 %v1007
      %1050 = vmatprep.subr.bf16.mxu0 0
      %1051 = vmatpush1.bf16.msra.mxu0 0
      %1052 = vmatprep.subr.bf16.mxu0 0
      %1053 = vmatpush1.bf16.msra.mxu0 0
      %1054 = vmatprep.subr.bf16.mxu0 0
      %1055 = vmatpush1.bf16.msra.mxu0 0
      %1056 = vmatprep.subr.bf16.mxu0 0
      %1057 = vmatpush1.bf16.msra.mxu0 0
      %1058 = vmatprep.subr.bf16.mxu0 0
      %1059 = vmatpush1.bf16.msra.mxu0 0
      %1060 = vmatprep.subr.bf16.mxu0 0
      %1061 = vmatpush1.bf16.msra.mxu0 0
      %1062 = vmatprep.subr.bf16.mxu0 0
      %1063 = vmatpush1.bf16.msra.mxu0 0
      %1064 = vmatprep.subr.bf16.mxu0 0
      %1065 = vmatpush1.bf16.msra.mxu0 0
      %1066 = vmatprep.subr.bf16.mxu0 0
      %1067 = vmatpush1.bf16.msra.mxu0 0
      %1068 = vmatprep.subr.bf16.mxu0 0
      %1069 = vmatpush1.bf16.msra.mxu0 0
      %1070 = vmatprep.mubr.bf16.mxu0 0
      %1071 = vmatmul.mubr.bf16.gmra.mrb[0].mxu0 %v1036
      %v1072 = vpop.f32.mrb[0].mxu0
      %v1073 = vadd.f32 %v864, %v1072
      %v1074 = vpop.f32.mrb[0].mxu0
      %v1075 = vadd.f32 %v866, %v1074
      %v1076 = vpop.f32.mrb[0].mxu0
      %v1077 = vadd.f32 %v868, %v1076
      %v1078 = vpop.f32.mrb[0].mxu0
      %v1079 = vadd.f32 %v870, %v1078
      %1080 = vdwg.mxu0
      %1081 = vmatprep.subr.bf16.mxu0 %v990
      %1082 = vmatpush1.bf16.msra.mxu0 %v989
      %1083 = vmatprep.subr.bf16.mxu0 %v994
      %1084 = vmatpush1.bf16.msra.mxu0 %v993
      %1085 = vmatprep.subr.bf16.mxu0 %v998
      %1086 = vmatpush1.bf16.msra.mxu0 %v997
      %1087 = vmatprep.subr.bf16.mxu0 %v1002
      %1088 = vmatpush1.bf16.msra.mxu0 %v1001
      %1089 = vmatprep.subr.bf16.mxu0 %v1006
      %1090 = vmatpush1.bf16.msra.mxu0 %v1005
      %1091 = vmatprep.subr.bf16.mxu0 %v1010
      %1092 = vmatpush1.bf16.msra.mxu0 %v1009
      %1093 = vmatprep.subr.bf16.mxu0 0
      %1094 = vmatpush1.bf16.msra.mxu0 0
      %1095 = vmatprep.subr.bf16.mxu0 0
      %1096 = vmatpush1.bf16.msra.mxu0 0
      %1097 = vmatprep.subr.bf16.mxu0 0
      %1098 = vmatpush1.bf16.msra.mxu0 0
      %1099 = vmatprep.subr.bf16.mxu0 0
      %1100 = vmatpush1.bf16.msra.mxu0 0
      %1101 = vmatprep.subr.bf16.mxu0 0
      %1102 = vmatpush1.bf16.msra.mxu0 0
      %1103 = vmatprep.subr.bf16.mxu0 0
      %1104 = vmatpush1.bf16.msra.mxu0 0
      %1105 = vmatprep.subr.bf16.mxu0 0
      %1106 = vmatpush1.bf16.msra.mxu0 0
      %1107 = vmatprep.subr.bf16.mxu0 0
      %1108 = vmatpush1.bf16.msra.mxu0 0
      %1109 = vmatprep.subr.bf16.mxu0 0
      %1110 = vmatpush1.bf16.msra.mxu0 0
      %1111 = vmatprep.subr.bf16.mxu0 0
      %1112 = vmatpush1.bf16.msra.mxu0 0
      %1113 = vmatprep.mubr.bf16.mxu0 0
      %1114 = vmatmul.mubr.bf16.gmra.mrb[0].mxu0 %v1036
      %v1115 = vpop.f32.mrb[0].mxu0
      %v1116 = vadd.f32 %v907, %v1115
      %v1117 = vpop.f32.mrb[0].mxu0
      %v1118 = vadd.f32 %v909, %v1117
      %v1119 = vpop.f32.mrb[0].mxu0
      %v1120 = vadd.f32 %v911, %v1119
      %v1121 = vpop.f32.mrb[0].mxu0
      %v1122 = vadd.f32 %v913, %v1121
      %1123 = vdwg.mxu0
      %v1124 = vld [vmem:[#allocation2 + $0x2] sm:$0xff]
      %v1125 = vld [vmem:[#allocation2 + $0xa] sm:$0x3f]
      %v1126 = vpack.c.bf16 %v1125, %v1124
      %s1127 = scalar_lea.vmem %s7, 384
      %v1128 = vld [vmem:[%s1127] sm:$0xff]
      %v1129 = vld [vmem:[%s1127 + $0x8] sm:$0xff]
      %v1130 = vld [vmem:[%s1127 + $0x10] sm:$0xff]
      %v1131 = vld [vmem:[%s1127 + $0x18] sm:$0xff]
      %v1132 = vld [vmem:[%s1127 + $0x20] sm:$0xff]
      %v1133 = vld [vmem:[%s1127 + $0x28] sm:$0xff]
      %v1134 = vld [vmem:[%s1127 + $0x30] sm:$0xff]
      %v1135 = vld [vmem:[%s1127 + $0x38] sm:$0xff]
      %v1136 = vld [vmem:[%s1127 + $0x40] sm:$0xff]
      %v1137 = vld [vmem:[%s1127 + $0x48] sm:$0xff]
      %v1138 = vld [vmem:[%s1127 + $0x50] sm:$0xff]
      %v1139 = vld [vmem:[%s1127 + $0x58] sm:$0xff]
      %v1140 = vld [vmem:[%s1127 + $0x60] sm:$0xff]
      %v1141 = vld [vmem:[%s1127 + $0x68] sm:$0xff]
      %v1142 = vld [vmem:[%s1127 + $0x70] sm:$0xff]
      %v1143 = vld [vmem:[%s1127 + $0x78] sm:$0xff]
      %v1144 = vld [vmem:[%s1127 + $0x80] sm:$0xff]
      %v1145 = vld [vmem:[%s1127 + $0x88] sm:$0xff]
      %v1146 = vld [vmem:[%s1127 + $0x90] sm:$0xff]
      %v1147 = vld [vmem:[%s1127 + $0x98] sm:$0xff]
      %v1148 = vld [vmem:[%s1127 + $0xa0] sm:$0xff]
      %v1149 = vld [vmem:[%s1127 + $0xa8] sm:$0xff]
      %v1150 = vld [vmem:[%s1127 + $0xb0] sm:$0xff]
      %v1151 = vld [vmem:[%s1127 + $0xb8] sm:$0xff]
      %v1176 = vunpack.c.l.b16 %v1128
      %v1177 = vunpack.c.h.b16 %v1128
      %v1178 = vunpack.c.l.b16 %v1129
      %v1179 = vunpack.c.h.b16 %v1129
      %v1180 = vunpack.c.l.b16 %v1130
      %v1181 = vunpack.c.h.b16 %v1130
      %v1182 = vunpack.c.l.b16 %v1131
      %v1183 = vunpack.c.h.b16 %v1131
      %v1184 = vunpack.c.l.b16 %v1132
      %v1185 = vunpack.c.h.b16 %v1132
      %v1186 = vunpack.c.l.b16 %v1133
      %v1187 = vunpack.c.h.b16 %v1133
      %v1188 = vunpack.c.l.b16 %v1134
      %v1189 = vunpack.c.h.b16 %v1134
      %v1190 = vunpack.c.l.b16 %v1135
      %v1191 = vunpack.c.h.b16 %v1135
      %v1192 = vunpack.c.l.b16 %v1136
      %v1193 = vunpack.c.h.b16 %v1136
      %v1194 = vunpack.c.l.b16 %v1137
      %v1195 = vunpack.c.h.b16 %v1137
      %v1196 = vunpack.c.l.b16 %v1138
      %v1197 = vunpack.c.h.b16 %v1138
      %v1198 = vunpack.c.l.b16 %v1139
      %v1199 = vunpack.c.h.b16 %v1139
      %v1200 = vunpack.c.l.b16 %v1140
      %v1201 = vunpack.c.h.b16 %v1140
      %v1202 = vunpack.c.l.b16 %v1141
      %v1203 = vunpack.c.h.b16 %v1141
      %v1204 = vunpack.c.l.b16 %v1142
      %v1205 = vunpack.c.h.b16 %v1142
      %v1206 = vunpack.c.l.b16 %v1143
      %v1207 = vunpack.c.h.b16 %v1143
      %v1208 = vunpack.c.l.b16 %v1144
      %v1209 = vunpack.c.h.b16 %v1144
      %v1210 = vunpack.c.l.b16 %v1145
      %v1211 = vunpack.c.h.b16 %v1145
      %v1212 = vunpack.c.l.b16 %v1146
      %v1213 = vunpack.c.h.b16 %v1146
      %v1214 = vunpack.c.l.b16 %v1147
      %v1215 = vunpack.c.h.b16 %v1147
      %v1216 = vunpack.c.l.b16 %v1148
      %v1217 = vunpack.c.h.b16 %v1148
      %v1218 = vunpack.c.l.b16 %v1149
      %v1219 = vunpack.c.h.b16 %v1149
      %v1220 = vunpack.c.l.b16 %v1150
      %v1221 = vunpack.c.h.b16 %v1150
      %v1222 = vunpack.c.l.b16 %v1151
      %v1223 = vunpack.c.h.b16 %v1151
      %v1224 = vpack.c.b16 %v1180, %v1176
      %v1225 = vpack.c.b16 %v1181, %v1177
      %v1226 = vpack.c.b16 %v1182, %v1178
      %v1227 = vpack.c.b16 %v1183, %v1179
      %v1228 = vpack.c.b16 %v1188, %v1184
      %v1229 = vpack.c.b16 %v1189, %v1185
      %v1230 = vpack.c.b16 %v1190, %v1186
      %v1231 = vpack.c.b16 %v1191, %v1187
      %v1232 = vpack.c.b16 %v1196, %v1192
      %v1233 = vpack.c.b16 %v1197, %v1193
      %v1234 = vpack.c.b16 %v1198, %v1194
      %v1235 = vpack.c.b16 %v1199, %v1195
      %v1236 = vpack.c.b16 %v1204, %v1200
      %v1237 = vpack.c.b16 %v1205, %v1201
      %v1238 = vpack.c.b16 %v1206, %v1202
      %v1239 = vpack.c.b16 %v1207, %v1203
      %v1240 = vpack.c.b16 %v1212, %v1208
      %v1241 = vpack.c.b16 %v1213, %v1209
      %v1242 = vpack.c.b16 %v1214, %v1210
      %v1243 = vpack.c.b16 %v1215, %v1211
      %v1244 = vpack.c.b16 %v1220, %v1216
      %v1245 = vpack.c.b16 %v1221, %v1217
      %v1246 = vpack.c.b16 %v1222, %v1218
      %v1247 = vpack.c.b16 %v1223, %v1219
      %v1273 = vsel %vm648, %v1126, 0
      %1275 = vmatprep.subr.bf16.mxu0 %v1225
      %1276 = vmatpush1.bf16.msra.mxu0 %v1224
      %1277 = vmatprep.subr.bf16.mxu0 %v1229
      %1278 = vmatpush1.bf16.msra.mxu0 %v1228
      %1279 = vmatprep.subr.bf16.mxu0 %v1233
      %1280 = vmatpush1.bf16.msra.mxu0 %v1232
      %1281 = vmatprep.subr.bf16.mxu0 %v1237
      %1282 = vmatpush1.bf16.msra.mxu0 %v1236
      %1283 = vmatprep.subr.bf16.mxu0 %v1241
      %1284 = vmatpush1.bf16.msra.mxu0 %v1240
      %1285 = vmatprep.subr.bf16.mxu0 %v1245
      %1286 = vmatpush1.bf16.msra.mxu0 %v1244
      %1287 = vmatprep.subr.bf16.mxu0 0
      %1288 = vmatpush1.bf16.msra.mxu0 0
      %1289 = vmatprep.subr.bf16.mxu0 0
      %1290 = vmatpush1.bf16.msra.mxu0 0
      %1291 = vmatprep.subr.bf16.mxu0 0
      %1292 = vmatpush1.bf16.msra.mxu0 0
      %1293 = vmatprep.subr.bf16.mxu0 0
      %1294 = vmatpush1.bf16.msra.mxu0 0
      %1295 = vmatprep.subr.bf16.mxu0 0
      %1296 = vmatpush1.bf16.msra.mxu0 0
      %1297 = vmatprep.subr.bf16.mxu0 0
      %1298 = vmatpush1.bf16.msra.mxu0 0
      %1299 = vmatprep.subr.bf16.mxu0 0
      %1300 = vmatpush1.bf16.msra.mxu0 0
      %1301 = vmatprep.subr.bf16.mxu0 0
      %1302 = vmatpush1.bf16.msra.mxu0 0
      %1303 = vmatprep.subr.bf16.mxu0 0
      %1304 = vmatpush1.bf16.msra.mxu0 0
      %1305 = vmatprep.subr.bf16.mxu0 0
      %1306 = vmatpush1.bf16.msra.mxu0 0
      %1307 = vmatprep.mubr.bf16.mxu0 0
      %1308 = vmatmul.mubr.bf16.gmra.mrb[0].mxu0 %v1273
      %v1309 = vpop.f32.mrb[0].mxu0
      %v1310 = vadd.f32 0.0, %v1309
      %v1311 = vpop.f32.mrb[0].mxu0
      %v1312 = vadd.f32 0.0, %v1311
      %v1313 = vpop.f32.mrb[0].mxu0
      %v1314 = vadd.f32 0.0, %v1313
      %v1315 = vpop.f32.mrb[0].mxu0
      %v1316 = vadd.f32 0.0, %v1315
      %1317 = vdwg.mxu0
      %1318 = vmatprep.subr.bf16.mxu0 %v1227
      %1319 = vmatpush1.bf16.msra.mxu0 %v1226
      %1320 = vmatprep.subr.bf16.mxu0 %v1231
      %1321 = vmatpush1.bf16.msra.mxu0 %v1230
      %1322 = vmatprep.subr.bf16.mxu0 %v1235
      %1323 = vmatpush1.bf16.msra.mxu0 %v1234
      %1324 = vmatprep.subr.bf16.mxu0 %v1239
      %1325 = vmatpush1.bf16.msra.mxu0 %v1238
      %1326 = vmatprep.subr.bf16.mxu0 %v1243
      %1327 = vmatpush1.bf16.msra.mxu0 %v1242
      %1328 = vmatprep.subr.bf16.mxu0 %v1247
      %1329 = vmatpush1.bf16.msra.mxu0 %v1246
      %1330 = vmatprep.subr.bf16.mxu0 0
      %1331 = vmatpush1.bf16.msra.mxu0 0
      %1332 = vmatprep.subr.bf16.mxu0 0
      %1333 = vmatpush1.bf16.msra.mxu0 0
      %1334 = vmatprep.subr.bf16.mxu0 0
      %1335 = vmatpush1.bf16.msra.mxu0 0
      %1336 = vmatprep.subr.bf16.mxu0 0
      %1337 = vmatpush1.bf16.msra.mxu0 0
      %1338 = vmatprep.subr.bf16.mxu0 0
      %1339 = vmatpush1.bf16.msra.mxu0 0
      %1340 = vmatprep.subr.bf16.mxu0 0
      %1341 = vmatpush1.bf16.msra.mxu0 0
      %1342 = vmatprep.subr.bf16.mxu0 0
      %1343 = vmatpush1.bf16.msra.mxu0 0
      %1344 = vmatprep.subr.bf16.mxu0 0
      %1345 = vmatpush1.bf16.msra.mxu0 0
      %1346 = vmatprep.subr.bf16.mxu0 0
      %1347 = vmatpush1.bf16.msra.mxu0 0
      %1348 = vmatprep.subr.bf16.mxu0 0
      %1349 = vmatpush1.bf16.msra.mxu0 0
      %1350 = vmatprep.mubr.bf16.mxu0 0
      %1351 = vmatmul.mubr.bf16.gmra.mrb[0].mxu0 %v1273
      %v1352 = vpop.f32.mrb[0].mxu0
      %v1353 = vadd.f32 0.0, %v1352
      %v1354 = vpop.f32.mrb[0].mxu0
      %v1355 = vadd.f32 0.0, %v1354
      %v1356 = vpop.f32.mrb[0].mxu0
      %v1357 = vadd.f32 0.0, %v1356
      %v1358 = vpop.f32.mrb[0].mxu0
      %v1359 = vadd.f32 0.0, %v1358
      %1360 = vdwg.mxu0
      %v1361 = vadd.f32 %v1073, %v1310
      %v1362 = vadd.f32 %v1075, %v1312
      %v1363 = vadd.f32 %v1116, %v1353
      %v1364 = vadd.f32 %v1118, %v1355
      %v1365 = vadd.f32 %v1077, %v1314
      %v1366 = vadd.f32 %v1079, %v1316
      %v1367 = vadd.f32 %v1120, %v1357
      %v1368 = vadd.f32 %v1122, %v1359
      %v1369 = vld [vmem:[%s8] sm:$0xf]
      %v1371 = vlaneseq
      %v1372 = vshrl.u32 %v1371, 7
      %v1373 = vsub.s32 0, %v1372
      %v1374 = vrot.slane %v1369, %v1373
      %v1375 = vlaneseq
      %v1376 = vshrl.u32 %v1375, 7
      %v1377 = vsub.s32 1, %v1376
      %v1378 = vrot.slane %v1369, %v1377
      %v1379 = vlaneseq
      %v1380 = vshrl.u32 %v1379, 7
      %v1381 = vsub.s32 2, %v1380
      %v1382 = vrot.slane %v1369, %v1381
      %v1383 = vlaneseq
      %v1384 = vshrl.u32 %v1383, 7
      %v1385 = vsub.s32 3, %v1384
      %v1386 = vrot.slane %v1369, %v1385
      %v1391 = vadd.f32 %v1361, %v1374
      %v1392 = vadd.f32 %v1362, %v1378
      %v1393 = vadd.f32 %v1363, %v1382
      %v1394 = vadd.f32 %v1364, %v1386
      %v1395 = vadd.f32 %v1365, %v1374
      %v1396 = vadd.f32 %v1366, %v1378
      %v1397 = vadd.f32 %v1367, %v1382
      %v1398 = vadd.f32 %v1368, %v1386
      %v1399 = vmax.f32 %v1391, 0.0
      %v1400 = vmax.f32 %v1392, 0.0
      %v1401 = vmax.f32 %v1393, 0.0
      %v1402 = vmax.f32 %v1394, 0.0
      %v1403 = vmax.f32 %v1395, 0.0
      %v1404 = vmax.f32 %v1396, 0.0
      %v1405 = vmax.f32 %v1397, 0.0
      %v1406 = vmax.f32 %v1398, 0.0
      %v1407 = vpack.c.bf16 %v1403, %v1399
      %v1408 = vpack.c.bf16 %v1404, %v1400
      %v1409 = vpack.c.bf16 %v1405, %v1401
      %v1410 = vpack.c.bf16 %v1406, %v1402
      %v1411 = vld [vmem:[%s9] sm:$0xf]
      %v1412 = vld [vmem:[%s9 + $0x4] sm:$0xf]
      %v1413 = vld [vmem:[%s9 + $0x8] sm:$0xf]
      %v1414 = vld [vmem:[%s9 + $0xc] sm:$0xf]
      %v1415 = vld [vmem:[%s9 + $0x10] sm:$0xf]
      %v1416 = vld [vmem:[%s9 + $0x14] sm:$0xf]
      %v1417 = vld [vmem:[%s9 + $0x18] sm:$0xf]
      %v1418 = vld [vmem:[%s9 + $0x1c] sm:$0xf]
      %v1419 = vld [vmem:[%s9 + $0x20] sm:$0xf]
      %v1420 = vld [vmem:[%s9 + $0x24] sm:$0xf]
      %v1421 = vld [vmem:[%s9 + $0x28] sm:$0xf]
      %v1422 = vld [vmem:[%s9 + $0x2c] sm:$0xf]
      %v1423 = vld [vmem:[%s9 + $0x30] sm:$0xf]
      %v1424 = vld [vmem:[%s9 + $0x34] sm:$0xf]
      %v1425 = vld [vmem:[%s9 + $0x38] sm:$0xf]
      %v1426 = vld [vmem:[%s9 + $0x3c] sm:$0xf]
      %v1427 = vld [vmem:[%s9 + $0x40] sm:$0xf]
      %v1428 = vld [vmem:[%s9 + $0x44] sm:$0xf]
      %v1429 = vld [vmem:[%s9 + $0x48] sm:$0xf]
      %v1430 = vld [vmem:[%s9 + $0x4c] sm:$0xf]
      %v1431 = vld [vmem:[%s9 + $0x50] sm:$0xf]
      %v1432 = vld [vmem:[%s9 + $0x54] sm:$0xf]
      %v1433 = vld [vmem:[%s9 + $0x58] sm:$0xf]
      %v1434 = vld [vmem:[%s9 + $0x5c] sm:$0xf]
      %v1435 = vld [vmem:[%s9 + $0x60] sm:$0xf]
      %v1436 = vld [vmem:[%s9 + $0x64] sm:$0xf]
      %v1437 = vld [vmem:[%s9 + $0x68] sm:$0xf]
      %v1438 = vld [vmem:[%s9 + $0x6c] sm:$0xf]
      %v1439 = vld [vmem:[%s9 + $0x70] sm:$0xf]
      %v1440 = vld [vmem:[%s9 + $0x74] sm:$0xf]
      %v1441 = vld [vmem:[%s9 + $0x78] sm:$0xf]
      %v1442 = vld [vmem:[%s9 + $0x7c] sm:$0xf]
      %v1443 = vld [vmem:[%s9 + $0x80] sm:$0xf]
      %v1444 = vld [vmem:[%s9 + $0x84] sm:$0xf]
      %v1445 = vld [vmem:[%s9 + $0x88] sm:$0xf]
      %v1446 = vld [vmem:[%s9 + $0x8c] sm:$0xf]
      %v1447 = vld [vmem:[%s9 + $0x90] sm:$0xf]
      %v1448 = vld [vmem:[%s9 + $0x94] sm:$0xf]
      %v1449 = vld [vmem:[%s9 + $0x98] sm:$0xf]
      %v1450 = vld [vmem:[%s9 + $0x9c] sm:$0xf]
      %v1451 = vld [vmem:[%s9 + $0xa0] sm:$0xf]
      %v1452 = vld [vmem:[%s9 + $0xa4] sm:$0xf]
      %v1453 = vld [vmem:[%s9 + $0xa8] sm:$0xf]
      %v1454 = vld [vmem:[%s9 + $0xac] sm:$0xf]
      %v1455 = vld [vmem:[%s9 + $0xb0] sm:$0xf]
      %v1456 = vld [vmem:[%s9 + $0xb4] sm:$0xf]
      %v1457 = vld [vmem:[%s9 + $0xb8] sm:$0xf]
      %v1458 = vld [vmem:[%s9 + $0xbc] sm:$0xf]
      %v1459 = vld [vmem:[%s9 + $0xc0] sm:$0xf]
      %v1460 = vld [vmem:[%s9 + $0xc4] sm:$0xf]
      %v1461 = vld [vmem:[%s9 + $0xc8] sm:$0xf]
      %v1462 = vld [vmem:[%s9 + $0xcc] sm:$0xf]
      %v1463 = vld [vmem:[%s9 + $0xd0] sm:$0xf]
      %v1464 = vld [vmem:[%s9 + $0xd4] sm:$0xf]
      %v1465 = vld [vmem:[%s9 + $0xd8] sm:$0xf]
      %v1466 = vld [vmem:[%s9 + $0xdc] sm:$0xf]
      %v1467 = vld [vmem:[%s9 + $0xe0] sm:$0xf]
      %v1468 = vld [vmem:[%s9 + $0xe4] sm:$0xf]
      %v1469 = vld [vmem:[%s9 + $0xe8] sm:$0xf]
      %v1470 = vld [vmem:[%s9 + $0xec] sm:$0xf]
      %v1471 = vld [vmem:[%s9 + $0xf0] sm:$0xf]
      %v1472 = vld [vmem:[%s9 + $0xf4] sm:$0xf]
      %v1473 = vld [vmem:[%s9 + $0xf8] sm:$0xf]
      %v1474 = vld [vmem:[%s9 + $0xfc] sm:$0xf]
      %v1475 = vld [vmem:[%s10] sm:$0x1]
      %v1477 = vlaneseq
      %v1478 = vshrl.u32 %v1477, 7
      %v1479 = vsub.s32 0, %v1478
      %v1480 = vrot.slane %v1475, %v1479
      %v1546 = vunpack.c.l.b16 %v1411
      %v1547 = vunpack.c.l.b16 %v1412
      %v1548 = vunpack.c.l.b16 %v1413
      %v1549 = vunpack.c.l.b16 %v1414
      %v1550 = vunpack.c.l.b16 %v1415
      %v1551 = vunpack.c.l.b16 %v1416
      %v1552 = vunpack.c.l.b16 %v1417
      %v1553 = vunpack.c.l.b16 %v1418
      %v1554 = vunpack.c.l.b16 %v1419
      %v1555 = vunpack.c.l.b16 %v1420
      %v1556 = vunpack.c.l.b16 %v1421
      %v1557 = vunpack.c.l.b16 %v1422
      %v1558 = vunpack.c.l.b16 %v1423
      %v1559 = vunpack.c.l.b16 %v1424
      %v1560 = vunpack.c.l.b16 %v1425
      %v1561 = vunpack.c.l.b16 %v1426
      %v1562 = vunpack.c.l.b16 %v1427
      %v1563 = vunpack.c.l.b16 %v1428
      %v1564 = vunpack.c.l.b16 %v1429
      %v1565 = vunpack.c.l.b16 %v1430
      %v1566 = vunpack.c.l.b16 %v1431
      %v1567 = vunpack.c.l.b16 %v1432
      %v1568 = vunpack.c.l.b16 %v1433
      %v1569 = vunpack.c.l.b16 %v1434
      %v1570 = vunpack.c.l.b16 %v1435
      %v1571 = vunpack.c.l.b16 %v1436
      %v1572 = vunpack.c.l.b16 %v1437
      %v1573 = vunpack.c.l.b16 %v1438
      %v1574 = vunpack.c.l.b16 %v1439
      %v1575 = vunpack.c.l.b16 %v1440
      %v1576 = vunpack.c.l.b16 %v1441
      %v1577 = vunpack.c.l.b16 %v1442
      %v1578 = vunpack.c.l.b16 %v1443
      %v1579 = vunpack.c.l.b16 %v1444
      %v1580 = vunpack.c.l.b16 %v1445
      %v1581 = vunpack.c.l.b16 %v1446
      %v1582 = vunpack.c.l.b16 %v1447
      %v1583 = vunpack.c.l.b16 %v1448
      %v1584 = vunpack.c.l.b16 %v1449
      %v1585 = vunpack.c.l.b16 %v1450
      %v1586 = vunpack.c.l.b16 %v1451
      %v1587 = vunpack.c.l.b16 %v1452
      %v1588 = vunpack.c.l.b16 %v1453
      %v1589 = vunpack.c.l.b16 %v1454
      %v1590 = vunpack.c.l.b16 %v1455
      %v1591 = vunpack.c.l.b16 %v1456
      %v1592 = vunpack.c.l.b16 %v1457
      %v1593 = vunpack.c.l.b16 %v1458
      %v1594 = vunpack.c.l.b16 %v1459
      %v1595 = vunpack.c.l.b16 %v1460
      %v1596 = vunpack.c.l.b16 %v1461
      %v1597 = vunpack.c.l.b16 %v1462
      %v1598 = vunpack.c.l.b16 %v1463
      %v1599 = vunpack.c.l.b16 %v1464
      %v1600 = vunpack.c.l.b16 %v1465
      %v1601 = vunpack.c.l.b16 %v1466
      %v1602 = vunpack.c.l.b16 %v1467
      %v1603 = vunpack.c.l.b16 %v1468
      %v1604 = vunpack.c.l.b16 %v1469
      %v1605 = vunpack.c.l.b16 %v1470
      %v1606 = vunpack.c.l.b16 %v1471
      %v1607 = vunpack.c.l.b16 %v1472
      %v1608 = vunpack.c.l.b16 %v1473
      %v1609 = vunpack.c.l.b16 %v1474
      %v1610 = vpack.c.b16 %v1547, %v1546
      %v1611 = vpack.c.b16 %v1549, %v1548
      %v1612 = vpack.c.b16 %v1551, %v1550
      %v1613 = vpack.c.b16 %v1553, %v1552
      %v1614 = vpack.c.b16 %v1555, %v1554
      %v1615 = vpack.c.b16 %v1557, %v1556
      %v1616 = vpack.c.b16 %v1559, %v1558
      %v1617 = vpack.c.b16 %v1561, %v1560
      %v1618 = vpack.c.b16 %v1563, %v1562
      %v1619 = vpack.c.b16 %v1565, %v1564
      %v1620 = vpack.c.b16 %v1567, %v1566
      %v1621 = vpack.c.b16 %v1569, %v1568
      %v1622 = vpack.c.b16 %v1571, %v1570
      %v1623 = vpack.c.b16 %v1573, %v1572
      %v1624 = vpack.c.b16 %v1575, %v1574
      %v1625 = vpack.c.b16 %v1577, %v1576
      %v1626 = vpack.c.b16 %v1579, %v1578
      %v1627 = vpack.c.b16 %v1581, %v1580
      %v1628 = vpack.c.b16 %v1583, %v1582
      %v1629 = vpack.c.b16 %v1585, %v1584
      %v1630 = vpack.c.b16 %v1587, %v1586
      %v1631 = vpack.c.b16 %v1589, %v1588
      %v1632 = vpack.c.b16 %v1591, %v1590
      %v1633 = vpack.c.b16 %v1593, %v1592
      %v1634 = vpack.c.b16 %v1595, %v1594
      %v1635 = vpack.c.b16 %v1597, %v1596
      %v1636 = vpack.c.b16 %v1599, %v1598
      %v1637 = vpack.c.b16 %v1601, %v1600
      %v1638 = vpack.c.b16 %v1603, %v1602
      %v1639 = vpack.c.b16 %v1605, %v1604
      %v1640 = vpack.c.b16 %v1607, %v1606
      %v1641 = vpack.c.b16 %v1609, %v1608
      %1674 = vmatprep.subr.bf16.mxu0 0
      %1675 = vmatpush1.bf16.msra.mxu0 %v1610
      %1676 = vmatprep.subr.bf16.mxu0 0
      %1677 = vmatpush1.bf16.msra.mxu0 %v1611
      %1678 = vmatprep.subr.bf16.mxu0 0
      %1679 = vmatpush1.bf16.msra.mxu0 %v1612
      %1680 = vmatprep.subr.bf16.mxu0 0
      %1681 = vmatpush1.bf16.msra.mxu0 %v1613
      %1682 = vmatprep.subr.bf16.mxu0 0
      %1683 = vmatpush1.bf16.msra.mxu0 %v1614
      %1684 = vmatprep.subr.bf16.mxu0 0
      %1685 = vmatpush1.bf16.msra.mxu0 %v1615
      %1686 = vmatprep.subr.bf16.mxu0 0
      %1687 = vmatpush1.bf16.msra.mxu0 %v1616
      %1688 = vmatprep.subr.bf16.mxu0 0
      %1689 = vmatpush1.bf16.msra.mxu0 %v1617
      %1690 = vmatprep.subr.bf16.mxu0 0
      %1691 = vmatpush1.bf16.msra.mxu0 %v1618
      %1692 = vmatprep.subr.bf16.mxu0 0
      %1693 = vmatpush1.bf16.msra.mxu0 %v1619
      %1694 = vmatprep.subr.bf16.mxu0 0
      %1695 = vmatpush1.bf16.msra.mxu0 %v1620
      %1696 = vmatprep.subr.bf16.mxu0 0
      %1697 = vmatpush1.bf16.msra.mxu0 %v1621
      %1698 = vmatprep.subr.bf16.mxu0 0
      %1699 = vmatpush1.bf16.msra.mxu0 %v1622
      %1700 = vmatprep.subr.bf16.mxu0 0
      %1701 = vmatpush1.bf16.msra.mxu0 %v1623
      %1702 = vmatprep.subr.bf16.mxu0 0
      %1703 = vmatpush1.bf16.msra.mxu0 %v1624
      %1704 = vmatprep.subr.bf16.mxu0 0
      %1705 = vmatpush1.bf16.msra.mxu0 %v1625
      %1706 = vmatprep.mubr.bf16.mxu0 %v1408
      %1707 = vmatmul.mubr.bf16.gmra.mrb[0].mxu0 %v1407
      %v1708 = vpop.f32.mrb[0].mxu0
      %v1709 = vadd.f32 %v1480, %v1708
      %v1710 = vpop.f32.mrb[0].mxu0
      %v1711 = vpop.f32.mrb[0].mxu0
      %v1712 = vadd.f32 %v1480, %v1711
      %v1713 = vpop.f32.mrb[0].mxu0
      %1714 = vdwg.mxu0
      %1715 = vmatprep.subr.bf16.mxu0 0
      %1716 = vmatpush1.bf16.msra.mxu0 %v1626
      %1717 = vmatprep.subr.bf16.mxu0 0
      %1718 = vmatpush1.bf16.msra.mxu0 %v1627
      %1719 = vmatprep.subr.bf16.mxu0 0
      %1720 = vmatpush1.bf16.msra.mxu0 %v1628
      %1721 = vmatprep.subr.bf16.mxu0 0
      %1722 = vmatpush1.bf16.msra.mxu0 %v1629
      %1723 = vmatprep.subr.bf16.mxu0 0
      %1724 = vmatpush1.bf16.msra.mxu0 %v1630
      %1725 = vmatprep.subr.bf16.mxu0 0
      %1726 = vmatpush1.bf16.msra.mxu0 %v1631
      %1727 = vmatprep.subr.bf16.mxu0 0
      %1728 = vmatpush1.bf16.msra.mxu0 %v1632
      %1729 = vmatprep.subr.bf16.mxu0 0
      %1730 = vmatpush1.bf16.msra.mxu0 %v1633
      %1731 = vmatprep.subr.bf16.mxu0 0
      %1732 = vmatpush1.bf16.msra.mxu0 %v1634
      %1733 = vmatprep.subr.bf16.mxu0 0
      %1734 = vmatpush1.bf16.msra.mxu0 %v1635
      %1735 = vmatprep.subr.bf16.mxu0 0
      %1736 = vmatpush1.bf16.msra.mxu0 %v1636
      %1737 = vmatprep.subr.bf16.mxu0 0
      %1738 = vmatpush1.bf16.msra.mxu0 %v1637
      %1739 = vmatprep.subr.bf16.mxu0 0
      %1740 = vmatpush1.bf16.msra.mxu0 %v1638
      %1741 = vmatprep.subr.bf16.mxu0 0
      %1742 = vmatpush1.bf16.msra.mxu0 %v1639
      %1743 = vmatprep.subr.bf16.mxu0 0
      %1744 = vmatpush1.bf16.msra.mxu0 %v1640
      %1745 = vmatprep.subr.bf16.mxu0 0
      %1746 = vmatpush1.bf16.msra.mxu0 %v1641
      %1747 = vmatprep.mubr.bf16.mxu0 %v1410
      %1748 = vmatmul.mubr.bf16.gmra.mrb[0].mxu0 %v1409
      %v1749 = vpop.f32.mrb[0].mxu0
      %v1750 = vadd.f32 %v1709, %v1749
      %v1751 = vpop.f32.mrb[0].mxu0
      %v1752 = vpop.f32.mrb[0].mxu0
      %v1753 = vadd.f32 %v1712, %v1752
      %v1754 = vpop.f32.mrb[0].mxu0
      %1755 = vdwg.mxu0
      %v1756 = vmax.f32 %v1750, 0.0
      %v1757 = vmax.f32 %v1753, 0.0
      %v1758 = vpack.c.bf16 %v1757, %v1756
      %v1759 = vld [vmem:[%s11] sm:$0xf]
      %v1760 = vld [vmem:[%s11 + $0x4] sm:$0xf]
      %v1761 = vld [vmem:[%s11 + $0x8] sm:$0xf]
      %v1762 = vld [vmem:[%s11 + $0xc] sm:$0xf]
      %v1763 = vld [vmem:[%s11 + $0x10] sm:$0xf]
      %v1764 = vld [vmem:[%s11 + $0x14] sm:$0xf]
      %v1765 = vld [vmem:[%s11 + $0x18] sm:$0xf]
      %v1766 = vld [vmem:[%s11 + $0x1c] sm:$0xf]
      %v1767 = vld [vmem:[%s11 + $0x20] sm:$0xf]
      %v1768 = vld [vmem:[%s11 + $0x24] sm:$0xf]
      %v1769 = vld [vmem:[%s11 + $0x28] sm:$0xf]
      %v1770 = vld [vmem:[%s11 + $0x2c] sm:$0xf]
      %v1771 = vld [vmem:[%s11 + $0x30] sm:$0xf]
      %v1772 = vld [vmem:[%s11 + $0x34] sm:$0xf]
      %v1773 = vld [vmem:[%s11 + $0x38] sm:$0xf]
      %v1774 = vld [vmem:[%s11 + $0x3c] sm:$0xf]
      %v1775 = vld [vmem:[%s12] sm:$0x1]
      %v1777 = vlaneseq
      %v1778 = vshrl.u32 %v1777, 7
      %v1779 = vsub.s32 0, %v1778
      %v1780 = vrot.slane %v1775, %v1779
      %v1798 = vunpack.c.l.b16 %v1759
      %v1799 = vunpack.c.l.b16 %v1760
      %v1800 = vunpack.c.l.b16 %v1761
      %v1801 = vunpack.c.l.b16 %v1762
      %v1802 = vunpack.c.l.b16 %v1763
      %v1803 = vunpack.c.l.b16 %v1764
      %v1804 = vunpack.c.l.b16 %v1765
      %v1805 = vunpack.c.l.b16 %v1766
      %v1806 = vunpack.c.l.b16 %v1767
      %v1807 = vunpack.c.l.b16 %v1768
      %v1808 = vunpack.c.l.b16 %v1769
      %v1809 = vunpack.c.l.b16 %v1770
      %v1810 = vunpack.c.l.b16 %v1771
      %v1811 = vunpack.c.l.b16 %v1772
      %v1812 = vunpack.c.l.b16 %v1773
      %v1813 = vunpack.c.l.b16 %v1774
      %v1814 = vpack.c.b16 %v1799, %v1798
      %v1815 = vpack.c.b16 %v1801, %v1800
      %v1816 = vpack.c.b16 %v1803, %v1802
      %v1817 = vpack.c.b16 %v1805, %v1804
      %v1818 = vpack.c.b16 %v1807, %v1806
      %v1819 = vpack.c.b16 %v1809, %v1808
      %v1820 = vpack.c.b16 %v1811, %v1810
      %v1821 = vpack.c.b16 %v1813, %v1812
      %1830 = vmatprep.subr.bf16.mxu0 0
      %1831 = vmatpush1.bf16.msra.mxu0 %v1814
      %1832 = vmatprep.subr.bf16.mxu0 0
      %1833 = vmatpush1.bf16.msra.mxu0 %v1815
      %1834 = vmatprep.subr.bf16.mxu0 0
      %1835 = vmatpush1.bf16.msra.mxu0 %v1816
      %1836 = vmatprep.subr.bf16.mxu0 0
      %1837 = vmatpush1.bf16.msra.mxu0 %v1817
      %1838 = vmatprep.subr.bf16.mxu0 0
      %1839 = vmatpush1.bf16.msra.mxu0 %v1818
      %1840 = vmatprep.subr.bf16.mxu0 0
      %1841 = vmatpush1.bf16.msra.mxu0 %v1819
      %1842 = vmatprep.subr.bf16.mxu0 0
      %1843 = vmatpush1.bf16.msra.mxu0 %v1820
      %1844 = vmatprep.subr.bf16.mxu0 0
      %1845 = vmatpush1.bf16.msra.mxu0 %v1821
      %1846 = vmatprep.subr.bf16.mxu0 0
      %1847 = vmatpush1.bf16.msra.mxu0 0
      %1848 = vmatprep.subr.bf16.mxu0 0
      %1849 = vmatpush1.bf16.msra.mxu0 0
      %1850 = vmatprep.subr.bf16.mxu0 0
      %1851 = vmatpush1.bf16.msra.mxu0 0
      %1852 = vmatprep.subr.bf16.mxu0 0
      %1853 = vmatpush1.bf16.msra.mxu0 0
      %1854 = vmatprep.subr.bf16.mxu0 0
      %1855 = vmatpush1.bf16.msra.mxu0 0
      %1856 = vmatprep.subr.bf16.mxu0 0
      %1857 = vmatpush1.bf16.msra.mxu0 0
      %1858 = vmatprep.subr.bf16.mxu0 0
      %1859 = vmatpush1.bf16.msra.mxu0 0
      %1860 = vmatprep.subr.bf16.mxu0 0
      %1861 = vmatpush1.bf16.msra.mxu0 0
      %1862 = vmatprep.mubr.bf16.mxu0 0
      %1863 = vmatmul.mubr.bf16.gmra.mrb[0].mxu0 %v1758
      %v1864 = vpop.f32.mrb[0].mxu0
      %v1865 = vadd.f32 %v1780, %v1864
      %v1866 = vpop.f32.mrb[0].mxu0
      %v1867 = vpop.f32.mrb[0].mxu0
      %v1868 = vadd.f32 %v1780, %v1867
      %v1869 = vpop.f32.mrb[0].mxu0
      %1870 = vdwg.mxu0
      %v1871 = vmax.f32 %v1865, 0.0
      %v1872 = vmax.f32 %v1868, 0.0
      %vm1873 = vcmask 261120
      %1874 = vst.msk [vmem:[%s440] sm:$0xff] %vm1873, %v1871
      %vm1875 = vcmask 259072
      %1876 = vst.msk [vmem:[%s440 + $0x8] sm:$0x3f] %vm1875, %v1872
      %p1877 = scmp.lt.s32.totalorder %s24, 1
      %s1878 = scalar_select %p1877, %s24, 1
      %s1879 = smul.addr %s1878, 2
      %s1880 = smul.addr %s1879, 8
      %s1881 = scalar_lea.vmem %s13, %s1880
      // Predicated region
      $region73: #{eeg_forward.1} parent=71 // pred_check
        %p1882 = pneg %p320
      $region74: #{eeg_forward.1} parent=71 // pred_check_branch
        %1884 = sbr.rel (%p1882) target = $region76
      $region75: #{eeg_forward.1} parent=71 // pred_region
        _
      $region76: #{eeg_forward.1} parent=71 // pred_fallthru
        _
    $region72: #{eeg_forward.1} parent=5 // pred_fallthru
      _
    %p1885 = scmp.le.s32.totalorder 2, %s19
    // Predicated region
    $region77: #{eeg_forward.1} parent=5 // pred_check
      %p1886 = pneg %p1885
    $region78: #{eeg_forward.1} parent=5 // pred_check_branch
      %1888 = sbr.rel (%p1886) target = $region80
    $region79: #{eeg_forward.1} parent=5 // pred_region
      %s1889 = ssub.s32 %s19, 2
      // Predicated region
      $region81: #{eeg_forward.1} parent=79 // pred_check
        %p1890 = pneg %p326
      $region82: #{eeg_forward.1} parent=79 // pred_check_branch
        %1892 = sbr.rel (%p1890) target = $region84
      $region83: #{eeg_forward.1} parent=79 // pred_region
        %p1893 = scmp.lt.s32.totalorder %s25, 1
        %s1894 = scalar_select %p1893, %s25, 1
        %s1895 = smul.addr %s1894, 2
        %s1896 = smul.addr %s1895, 8
        %s1897 = scalar_lea.vmem %s13, %s1896
      $region84: #{eeg_forward.1} parent=79 // pred_fallthru
        _
    $region80: #{eeg_forward.1} parent=5 // pred_fallthru
      _
  $region6: #{eeg_forward.1} parent=0 // loop_footer
    %s23 = sadd.s32 1, %s19
  $region7: #{eeg_forward.1} parent=0 // loop_footer_branch
    %18 = sbr.rel target = $region3
  $region8: #{eeg_forward.1} parent=0 // loop_exit
    _

</llo_original>
